<compile_context>
chip_gen: v5e
topology: v5e:2x2
jax: 0.10.0
libtpu: 0.0.40
codegen_flags: <defaults>
</compile_context>

<pallas_src>
import math
import functools

import jax
import jax.numpy as jnp
from jax import lax
from jax.experimental import pallas as pl
from jax.experimental.pallas import tpu as pltpu

EPS = 1e-5  # config.norm_eps


def _rms(x, w):
    # RMSNorm: x * rsqrt(mean(x^2, -1) + eps) * weight   (f32 math)
    return x * lax.rsqrt(jnp.mean(x * x, axis=-1, keepdims=True) + EPS) * w


def _bf16(x):
    return x.astype(jnp.bfloat16)


def cross_attn_block_kernel(
    # inputs
    x_ref, cs_ref, mask_ref, mout_ref,
    attn_nw_ref, wq_ref, wkv_ref, wo_ref, qn_ref, kn_ref, ga_ref,
    ffn_nw_ref, w1_ref, w3_ref, w2_ref, gm_ref,
    # output
    out_ref,
    # scratch
    k_scr, v_scr, attn_scr, h_scr, hn_scr, acc_scr,
    *, n_head, n_local_heads, head_dim,
):
    qt = pl.program_id(1)           # query-tile index
    it = pl.program_id(2)           # FFN intermediate-tile index (reduction axis)
    n_it = pl.num_programs(2)

    hd = head_dim
    kv_size = n_local_heads * hd
    rep = n_head // n_local_heads
    scale = 1.0 / math.sqrt(hd)
    f32 = jnp.float32

    # ---- stage 0: KV projection (+ K-norm) of cross_states, once per batch element ----
    @pl.when(jnp.logical_and(qt == 0, it == 0))
    def _():
        cs = cs_ref[0]                                                   # (Skv, D) bf16
        kv = jnp.dot(cs, wkv_ref[...], preferred_element_type=f32)      # (Skv, 2*kv_size)
        kn_w = kn_ref[0]
        for lh in range(n_local_heads):
            sl = slice(lh * hd, (lh + 1) * hd)
            # k_norm pre-applied at projection time: never recomputed per q tile.
            k_scr[:, sl] = _bf16(_rms(kv[:, sl], kn_w))
        v_scr[...] = _bf16(kv[:, kv_size:])

    # ---- stage 1: attention + gated residual, once per (batch, q-tile) ----
    @pl.when(it == 0)
    def _():
        xb = x_ref[0]                                                    # (TQ, D) f32
        xn = _rms(xb, attn_nw_ref[0])                                    # attention_norm
        q = jnp.dot(_bf16(xn), wq_ref[...], preferred_element_type=f32)  # (TQ, D)
        mask2d = mask_ref[0, 0].astype(f32)                              # (TQ, Skv) additive
        qn_w = qn_ref[0] * scale       # fold 1/sqrt(head_dim) into the q_norm weight

        for lh in range(n_local_heads):
            # Ref slices (not a whole-scratch load); K is already RMS-normed + bf16.
            k_lh = k_scr[:, lh * hd:(lh + 1) * hd]                       # (Skv, hd) bf16
            v_lh = v_scr[:, lh * hd:(lh + 1) * hd]                       # (Skv, hd) bf16
            for r in range(rep):
                hi = lh * rep + r      # query head hi uses local head hi // rep == lh
                qh = _bf16(_rms(q[:, hi * hd:(hi + 1) * hd], qn_w))      # (TQ, hd)
                s = lax.dot_general(qh, k_lh, (((1,), (1,)), ((), ())),
                                    preferred_element_type=f32)          # (TQ, Skv)
                s = s + mask2d
                m = jnp.max(s, axis=-1, keepdims=True)
                e = jnp.exp(_bf16(s - m))                                # bf16 exp (EUP)
                inv = pl.reciprocal(
                    jnp.sum(e.astype(f32), axis=-1, keepdims=True), approx=True)
                # denominator applied AFTER the PV matmul ((TQ,hd) scale, not (TQ,Skv) mul)
                o = jnp.dot(e, v_lh, preferred_element_type=f32) * inv   # (TQ, hd)
                attn_scr[:, hi * hd:(hi + 1) * hd] = _bf16(o)

        # single full-D wo matmul instead of n_head small K=hd matmuls
        y = jnp.dot(attn_scr[...], wo_ref[...], preferred_element_type=f32)  # (TQ, D)
        hres = xb + y * ga_ref[0, 0]                                     # gate already tanh'ed
        h_scr[...] = hres
        hn_scr[...] = _bf16(_rms(hres, ffn_nw_ref[0]))                   # ffn_norm, kept bf16
        acc_scr[...] = jnp.zeros_like(acc_scr)                           # init FFN accumulator

    # ---- stage 2: SwiGLU partial for this intermediate tile (every grid step) ----
    hn = hn_scr[...]                                                     # (TQ, D) bf16
    g = jnp.dot(hn, w1_ref[...], preferred_element_type=f32)             # (TQ, TI)
    u = jnp.dot(hn, w3_ref[...], preferred_element_type=f32)             # (TQ, TI)
    act = _bf16(g * jax.nn.sigmoid(g) * u)                               # silu(g) * u
    acc_scr[...] += jnp.dot(act, w2_ref[...], preferred_element_type=f32)

    # ---- stage 3: gated + masked residual, write output at the last intermediate tile ----
    @pl.when(it == n_it - 1)
    def _():
        mout = mout_ref[0, 0].astype(f32)                                # (TQ, 1)
        out_ref[0] = (h_scr[...] + acc_scr[...] * gm_ref[0, 0] * mout
                      ).astype(out_ref.dtype)


def _default_vmem_limit():
    # Generation-dependent VMEM budget: ~85% of physical (≈54 MiB on v7x, ≈108 MiB on v5e/v6e),
    # conservative 48 MiB fallback if the query is unavailable.
    try:
        cap = pltpu.get_tpu_info().vmem_capacity_bytes
        return int(cap * 0.85)
    except Exception:
        return 48 * 1024 * 1024


def cross_attention_block(x, cross_states, mask, mask_out, params, *,
                          n_head, n_local_heads, head_dim,
                          q_tile=None, inter_tile=None, vmem_limit_bytes=None):
    B, S, D = x.shape
    Skv = cross_states.shape[1]
    inter = params['w1_t'].shape[1]
    kv_size = n_local_heads * head_dim
    kv_out = 2 * kv_size

    # Prefer the largest TQ that fits: every extra q tile re-streams the full FFN weights.
    TQ = q_tile if q_tile is not None else min(S, 512)
    TI = inter_tile if inter_tile is not None else min(inter, 512)
    assert S % TQ == 0 and inter % TI == 0
    nq, ni = S // TQ, inter // TI

    bf16 = jnp.bfloat16
    # Ship weights, the additive mask AND cross_states in bf16: native MXU path, half the
    # HBM->VMEM DMA bytes, half the VMEM footprint. Norm weights stay f32.
    wq, wkv, wo = (params[k].astype(bf16) for k in ('wq_t', 'wkv_t', 'wo_t'))
    w1, w3, w2 = (params[k].astype(bf16) for k in ('w1_t', 'w3_t', 'w2_t'))
    mask_bf = mask.astype(bf16)
    cs_bf = cross_states.astype(bf16)
    # tanh of the (1,1) gates done once in the wrapper; kernel multiplies by the SMEM scalar.
    ga = jnp.tanh(params['gate_attn']).astype(jnp.float32)
    gm = jnp.tanh(params['gate_mlp']).astype(jnp.float32)

    def const(shp):
        zeros = (0,) * len(shp)
        return pl.BlockSpec(shp, lambda b, qt, it: zeros)

    smem_scalar = pl.BlockSpec(memory_space=pltpu.MemorySpace.SMEM)
    # Deeper buffering on the it-indexed FFN weights so the first tile's DMA hides behind
    # the long it==0 attention step (only worth an extra buffer when the axis is long enough).
    ffn_buf = pl.Buffered(3) if ni >= 3 else pl.Buffered(2)

    in_specs = [
        pl.BlockSpec((1, TQ, D), lambda b, qt, it: (b, qt, 0)),          # x (q-tiled)
        pl.BlockSpec((1, Skv, D), lambda b, qt, it: (b, 0, 0)),          # cross_states (bf16)
        pl.BlockSpec((1, 1, TQ, Skv), lambda b, qt, it: (b, 0, qt, 0)),  # additive mask (q-tiled)
        pl.BlockSpec((1, 1, TQ, 1), lambda b, qt, it: (b, 0, qt, 0)),    # mask_out (q-tiled)
        const((1, D)),                                                   # attention_norm.weight
        const((D, D)),                                                   # wq^T (bf16)
        const((D, kv_out)),                                              # wkv^T (bf16)
        const((D, D)),                                                   # wo^T (bf16)
        const((1, head_dim)),                                            # q_norm.weight
        const((1, head_dim)),                                            # k_norm.weight
        smem_scalar,                                                     # tanh(attn gate) -> SMEM
        const((1, D)),                                                   # ffn_norm.weight
        pl.BlockSpec((D, TI), lambda b, qt, it: (0, it), pipeline_mode=ffn_buf),  # w1^T tile
        pl.BlockSpec((D, TI), lambda b, qt, it: (0, it), pipeline_mode=ffn_buf),  # w3^T tile
        pl.BlockSpec((TI, D), lambda b, qt, it: (it, 0), pipeline_mode=ffn_buf),  # w2^T tile
        smem_scalar,                                                     # tanh(mlp gate) -> SMEM
    ]
    # NOTE: at production D (>=4096) the resident wq/wkv/wo blocks should additionally be tiled
    # (extra grid axis or manual DMA) to fit v7x's 64 MiB; at these widths they fit comfortably.

    kernel = functools.partial(
        cross_attn_block_kernel,
        n_head=n_head, n_local_heads=n_local_heads, head_dim=head_dim)

    vmem_limit = vmem_limit_bytes if vmem_limit_bytes is not None else _default_vmem_limit()

    return pl.pallas_call(
        kernel,
        out_shape=jax.ShapeDtypeStruct((B, S, D), x.dtype),
        grid=(B, nq, ni),
        in_specs=in_specs,
        out_specs=pl.BlockSpec((1, TQ, D), lambda b, qt, it: (b, qt, 0)),
        scratch_shapes=[
            pltpu.VMEM((Skv, kv_size), jnp.bfloat16),  # K cache (already k-normed, bf16)
            pltpu.VMEM((Skv, kv_size), jnp.bfloat16),  # V cache (bf16)
            pltpu.VMEM((TQ, D), jnp.bfloat16),         # per-head attention outputs (wo input)
            pltpu.VMEM((TQ, D), jnp.float32),          # h = x + gated attention (residual source)
            pltpu.VMEM((TQ, D), jnp.bfloat16),         # ffn_norm(h), reused across inter tiles
            pltpu.VMEM((TQ, D), jnp.float32),          # FFN (w2) f32 accumulator
        ],
        compiler_params=pltpu.CompilerParams(
            # Batch axis parallel (2 TCs on v7x). The q-tile / inter axes MUST stay "arbitrary"
            # (sequential, inter innermost): k_scr/v_scr are reused across q tiles and
            # h_scr/hn_scr/acc_scr across inter tiles — changing this silently breaks the kernel.
            dimension_semantics=("parallel", "arbitrary", "arbitrary"),
            vmem_limit_bytes=vmem_limit,
        ),
    )(x, cs_bf, mask_bf, mask_out,
      params['attn_norm_w'], wq, wkv, wo,
      params['q_norm_w'], params['k_norm_w'], ga,
      params['ffn_norm_w'], w1, w3, w2, gm)


def reference(x, cs, mask, mask_out, p, *, n_head, n_local_heads, head_dim):
    # Pure-JAX (f32) mirror of the PyTorch forward, for correctness check.
    def rms(v, w):
        return v * lax.rsqrt(jnp.mean(v * v, axis=-1, keepdims=True) + EPS) * w
    B, S, D = x.shape
    Skv = cs.shape[1]
    rep = n_head // n_local_heads
    kv_size = n_local_heads * head_dim
    xn = rms(x, p['attn_norm_w'][0])
    q = (xn @ p['wq_t']).reshape(B, S, n_head, head_dim).transpose(0, 2, 1, 3)
    q = rms(q, p['q_norm_w'][0])
    kv = cs @ p['wkv_t']
    k = kv[..., :kv_size].reshape(B, Skv, n_local_heads, head_dim).transpose(0, 2, 1, 3)
    v = kv[..., kv_size:].reshape(B, Skv, n_local_heads, head_dim).transpose(0, 2, 1, 3)
    k = jnp.repeat(k, rep, axis=1)
    v = jnp.repeat(v, rep, axis=1)
    k = rms(k, p['k_norm_w'][0])
    scores = jnp.einsum('bhqd,bhkd->bhqk', q, k) / math.sqrt(head_dim) + mask
    attn = jax.nn.softmax(scores, axis=-1)
    y = jnp.einsum('bhqk,bhkd->bhqd', attn, v)
    y = y.transpose(0, 2, 1, 3).reshape(B, S, D) @ p['wo_t']
    h = x + y * jnp.tanh(p['gate_attn'][0, 0])
    hn = rms(h, p['ffn_norm_w'][0])
    g = hn @ p['w1_t']
    u = hn @ p['w3_t']
    ff = (g * jax.nn.sigmoid(g) * u) @ p['w2_t']
    return h + ff * jnp.tanh(p['gate_mlp'][0, 0]) * mask_out[:, 0]


if __name__ == "__main__":
    # Small shapes, sized so the q-tile and inter-tile grid axes are actually exercised (2 tiles each).
    B, S, Skv, D = 2, 16, 16, 32
    n_head, n_local_heads = 4, 2
    head_dim = D // n_head            # ModelArgs.__post_init__: head_dim = dim // n_head
    inter = 256                       # config.intermediate_size (small synthetic value)

    key = jax.random.PRNGKey(0)
    keys = jax.random.split(key, 12)
    init = lambda k, shp: 0.05 * jax.random.normal(k, shp, jnp.float32)

    params = dict(
        attn_norm_w=jnp.ones((1, D), jnp.float32),      # RMSNorm weights init to 1 (as torch)
        ffn_norm_w=jnp.ones((1, D), jnp.float32),
        q_norm_w=jnp.ones((1, head_dim), jnp.float32),
        k_norm_w=jnp.ones((1, head_dim), jnp.float32),
        wq_t=init(keys[0], (D, D)),                     # Linear weights (in, out) = W.T
        wkv_t=init(keys[1], (D, 2 * n_local_heads * head_dim)),
        wo_t=init(keys[2], (D, D)),
        w1_t=init(keys[3], (D, inter)),
        w3_t=init(keys[4], (D, inter)),
        w2_t=init(keys[5], (inter, D)),
        # NOTE: torch inits both gates to 0 (block degenerates to identity);
        # use a nonzero deterministic value so the kernel math is actually exercised.
        gate_attn=jnp.full((1, 1), 0.5, jnp.float32),
        gate_mlp=jnp.full((1, 1), 0.5, jnp.float32),
    )

    x = jax.random.normal(keys[6], (B, S, D), jnp.float32)
    cross_states = jax.random.normal(keys[7], (B, Skv, D), jnp.float32)

    # Additive cross-attention mask with some positions blocked (every row keeps >=1 visible kv).
    vis = jax.random.bernoulli(keys[8], 0.8, (B, 1, S, Skv))
    vis = vis.at[..., 0].set(True)
    mask = jnp.where(vis, 0.0, -1e9).astype(jnp.float32)
    # cross_attention_mask_out: zero out some query rows' FFN contribution.
    mask_out = jax.random.bernoulli(keys[9], 0.7, (B, 1, S, 1)).astype(jnp.float32)

    out = cross_attention_block(
        x, cross_states, mask, mask_out, params,
        n_head=n_head, n_local_heads=n_local_heads, head_dim=head_dim,
        q_tile=8, inter_tile=128)
    out = jax.block_until_ready(out)

    ref = reference(x, cross_states, mask, mask_out, params,
                    n_head=n_head, n_local_heads=n_local_heads, head_dim=head_dim)
    assert out.shape == (B, S, D)
    # bf16 MXU operands, bf16 exp and approx reciprocal (f32 accumulation everywhere) ->
    # relaxed tolerance vs the pure-f32 reference.
    assert jnp.allclose(out, ref, atol=2e-2, rtol=2e-2), "mismatch vs JAX reference"
    print("KERNEL_OK")
</pallas_src>

<mosaic_0001>
module attributes {stable_mosaic.version = 11 : i64} {
  func.func @cross_attn_block_kernel(%arg0: i32, %arg1: i32, %arg2: i32, %arg3: memref<1x8x32xf32, #tpu.memory_space<vmem>>, %arg4: memref<1x16x32xbf16, #tpu.memory_space<vmem>>, %arg5: memref<1x1x8x16xbf16, #tpu.memory_space<vmem>>, %arg6: memref<1x1x8x1xf32, #tpu.memory_space<vmem>>, %arg7: memref<1x32xf32, #tpu.memory_space<vmem>>, %arg8: memref<32x32xbf16, #tpu.memory_space<vmem>>, %arg9: memref<32x32xbf16, #tpu.memory_space<vmem>>, %arg10: memref<32x32xbf16, #tpu.memory_space<vmem>>, %arg11: memref<1x8xf32, #tpu.memory_space<vmem>>, %arg12: memref<1x8xf32, #tpu.memory_space<vmem>>, %arg13: memref<1x1xf32, #tpu.memory_space<smem>>, %arg14: memref<1x32xf32, #tpu.memory_space<vmem>>, %arg15: memref<32x128xbf16, #tpu.memory_space<vmem>>, %arg16: memref<32x128xbf16, #tpu.memory_space<vmem>>, %arg17: memref<128x32xbf16, #tpu.memory_space<vmem>>, %arg18: memref<1x1xf32, #tpu.memory_space<smem>>, %arg19: memref<1x8x32xf32, #tpu.memory_space<vmem>>, %arg20: memref<16x16xbf16, #tpu.memory_space<vmem>>, %arg21: memref<16x16xbf16, #tpu.memory_space<vmem>>, %arg22: memref<8x32xbf16, #tpu.memory_space<vmem>>, %arg23: memref<8x32xf32, #tpu.memory_space<vmem>>, %arg24: memref<8x32xbf16, #tpu.memory_space<vmem>>, %arg25: memref<8x32xf32, #tpu.memory_space<vmem>>) attributes {dimension_semantics = [#tpu.dimension_semantics<parallel>, #tpu.dimension_semantics<arbitrary>, #tpu.dimension_semantics<arbitrary>], iteration_bounds = array<i64: 2, 2, 2>, scalar_prefetch = 0 : i64, scratch_operands = 6 : i64, tpu.core_type = #tpu.core_type<tc>, window_params = [{transform_indices = @transform_0, window_bounds = array<i64: 1, 8, 32>}, {transform_indices = @transform_1, window_bounds = array<i64: 1, 16, 32>}, {transform_indices = @transform_2, window_bounds = array<i64: 1, 1, 8, 16>}, {transform_indices = @transform_3, window_bounds = array<i64: 1, 1, 8, 1>}, {pipeline_mode = #tpu.pipeline_mode<synchronous>, transform_indices = @transform_4, window_bounds = array<i64: 1, 32>}, {pipeline_mode = #tpu.pipeline_mode<synchronous>, transform_indices = @transform_5, window_bounds = array<i64: 32, 32>}, {pipeline_mode = #tpu.pipeline_mode<synchronous>, transform_indices = @transform_6, window_bounds = array<i64: 32, 32>}, {pipeline_mode = #tpu.pipeline_mode<synchronous>, transform_indices = @transform_7, window_bounds = array<i64: 32, 32>}, {pipeline_mode = #tpu.pipeline_mode<synchronous>, transform_indices = @transform_8, window_bounds = array<i64: 1, 8>}, {pipeline_mode = #tpu.pipeline_mode<synchronous>, transform_indices = @transform_9, window_bounds = array<i64: 1, 8>}, {transform_indices = @transform_10, window_bounds = array<i64: 1, 1>}, {pipeline_mode = #tpu.pipeline_mode<synchronous>, transform_indices = @transform_11, window_bounds = array<i64: 1, 32>}, {pipeline_mode = #tpu.pipeline_mode<double_buffered>, transform_indices = @transform_12, window_bounds = array<i64: 32, 128>}, {pipeline_mode = #tpu.pipeline_mode<double_buffered>, transform_indices = @transform_13, window_bounds = array<i64: 32, 128>}, {pipeline_mode = #tpu.pipeline_mode<double_buffered>, transform_indices = @transform_14, window_bounds = array<i64: 128, 32>}, {transform_indices = @transform_15, window_bounds = array<i64: 1, 1>}, {transform_indices = @transform_16, window_bounds = array<i64: 1, 8, 32>}]} {
    %c0_i32 = arith.constant 0 : i32
    %0 = arith.cmpi eq, %arg1, %c0_i32 : i32
    %c0_i32_0 = arith.constant 0 : i32
    %1 = arith.cmpi eq, %arg2, %c0_i32_0 : i32
    %2 = arith.andi %0, %1 : i1
    %3 = arith.extui %2 : i1 to i32
    %c0_i32_1 = arith.constant 0 : i32
    %4 = arith.cmpi ne, %3, %c0_i32_1 : i32
    scf.if %4 {
      %c0_19 = arith.constant 0 : index
      %c0_20 = arith.constant 0 : index
      %c0_21 = arith.constant 0 : index
      %29 = vector.load %arg4[%c0_19, %c0_20, %c0_21] : memref<1x16x32xbf16, #tpu.memory_space<vmem>>, vector<1x16x32xbf16>
      %30 = vector.shape_cast %29 : vector<1x16x32xbf16> to vector<16x32xbf16>
      %c0_22 = arith.constant 0 : index
      %c0_23 = arith.constant 0 : index
      %31 = vector.load %arg9[%c0_22, %c0_23] : memref<32x32xbf16, #tpu.memory_space<vmem>>, vector<32x32xbf16>
      %cst_24 = arith.constant dense<0.000000e+00> : vector<16x32xf32>
      %32 = tpu.matmul %30, %31, %cst_24 {dimension_numbers = #tpu.dot_dimension_numbers<[1], [0], [0], [1], [0, 0, 1, 1], [], []>} : vector<16x32xbf16>, vector<32x32xbf16>, vector<16x32xf32> -> vector<16x32xf32>
      %c0_25 = arith.constant 0 : index
      %c0_26 = arith.constant 0 : index
      %33 = vector.load %arg12[%c0_25, %c0_26] : memref<1x8xf32, #tpu.memory_space<vmem>>, vector<1x8xf32>
      %34 = vector.shape_cast %33 : vector<1x8xf32> to vector<8xf32>
      %35 = vector.extract_strided_slice %32 {offsets = [0, 0], sizes = [16, 8], strides = [1, 1]} : vector<16x32xf32> to vector<16x8xf32>
      %36 = arith.mulf %35, %35 : vector<16x8xf32>
      %cst_27 = arith.constant dense<0.000000e+00> : vector<16xf32>
      %37 = vector.multi_reduction <add>, %36, %cst_27 [1] : vector<16x8xf32> to vector<16xf32>
      %38 = vector.shape_cast %37 : vector<16xf32> to vector<16x1xf32>
      %cst_28 = arith.constant 8.000000e+00 : f32
      %39 = vector.broadcast %cst_28 : f32 to vector<16x1xf32>
      %40 = arith.divf %38, %39 : vector<16x1xf32>
      %cst_29 = arith.constant 9.99999974E-6 : f32
      %41 = vector.broadcast %cst_29 : f32 to vector<16x1xf32>
      %42 = arith.addf %40, %41 : vector<16x1xf32>
      %43 = math.rsqrt %42 : vector<16x1xf32>
      %44 = vector.broadcast %43 : vector<16x1xf32> to vector<16x8xf32>
      %45 = arith.mulf %35, %44 : vector<16x8xf32>
      %46 = vector.shape_cast %34 : vector<8xf32> to vector<1x8xf32>
      %47 = vector.broadcast %46 : vector<1x8xf32> to vector<16x8xf32>
      %48 = arith.mulf %45, %47 : vector<16x8xf32>
      %49 = arith.truncf %48 : vector<16x8xf32> to vector<16x8xbf16>
      %c0_30 = arith.constant 0 : index
      %c0_31 = arith.constant 0 : index
      %50 = vector.load %arg20[%c0_30, %c0_31] : memref<16x16xbf16, #tpu.memory_space<vmem>>, vector<16x8xbf16>
      tpu.vector_store %arg20[%c0_30, %c0_31], %49 {strides = array<i32>} : memref<16x16xbf16, #tpu.memory_space<vmem>>, vector<16x8xbf16>,
      %51 = vector.extract_strided_slice %32 {offsets = [0, 8], sizes = [16, 8], strides = [1, 1]} : vector<16x32xf32> to vector<16x8xf32>
      %52 = arith.mulf %51, %51 : vector<16x8xf32>
      %cst_32 = arith.constant dense<0.000000e+00> : vector<16xf32>
      %53 = vector.multi_reduction <add>, %52, %cst_32 [1] : vector<16x8xf32> to vector<16xf32>
      %54 = vector.shape_cast %53 : vector<16xf32> to vector<16x1xf32>
      %cst_33 = arith.constant 8.000000e+00 : f32
      %55 = vector.broadcast %cst_33 : f32 to vector<16x1xf32>
      %56 = arith.divf %54, %55 : vector<16x1xf32>
      %cst_34 = arith.constant 9.99999974E-6 : f32
      %57 = vector.broadcast %cst_34 : f32 to vector<16x1xf32>
      %58 = arith.addf %56, %57 : vector<16x1xf32>
      %59 = math.rsqrt %58 : vector<16x1xf32>
      %60 = vector.broadcast %59 : vector<16x1xf32> to vector<16x8xf32>
      %61 = arith.mulf %51, %60 : vector<16x8xf32>
      %62 = vector.shape_cast %34 : vector<8xf32> to vector<1x8xf32>
      %63 = vector.broadcast %62 : vector<1x8xf32> to vector<16x8xf32>
      %64 = arith.mulf %61, %63 : vector<16x8xf32>
      %65 = arith.truncf %64 : vector<16x8xf32> to vector<16x8xbf16>
      %c0_35 = arith.constant 0 : index
      %c8 = arith.constant 8 : index
      %66 = vector.load %arg20[%c0_35, %c8] : memref<16x16xbf16, #tpu.memory_space<vmem>>, vector<16x8xbf16>
      tpu.vector_store %arg20[%c0_35, %c8], %65 {strides = array<i32>} : memref<16x16xbf16, #tpu.memory_space<vmem>>, vector<16x8xbf16>,
      %67 = vector.extract_strided_slice %32 {offsets = [0, 16], sizes = [16, 16], strides = [1, 1]} : vector<16x32xf32> to vector<16x16xf32>
      %68 = arith.truncf %67 : vector<16x16xf32> to vector<16x16xbf16>
      %c0_36 = arith.constant 0 : index
      %c0_37 = arith.constant 0 : index
      %69 = vector.load %arg21[%c0_36, %c0_37] : memref<16x16xbf16, #tpu.memory_space<vmem>>, vector<16x16xbf16>
      tpu.vector_store %arg21[%c0_36, %c0_37], %68 {strides = array<i32>} : memref<16x16xbf16, #tpu.memory_space<vmem>>, vector<16x16xbf16>,
    } else {
    }
    %c0_i32_2 = arith.constant 0 : i32
    %5 = arith.cmpi eq, %arg2, %c0_i32_2 : i32
    %6 = arith.extui %5 : i1 to i32
    %c0_i32_3 = arith.constant 0 : i32
    %7 = arith.cmpi ne, %6, %c0_i32_3 : i32
    scf.if %7 {
      %c0_19 = arith.constant 0 : index
      %c0_20 = arith.constant 0 : index
      %c0_21 = arith.constant 0 : index
      %29 = vector.load %arg3[%c0_19, %c0_20, %c0_21] : memref<1x8x32xf32, #tpu.memory_space<vmem>>, vector<1x8x32xf32>
      %30 = vector.shape_cast %29 : vector<1x8x32xf32> to vector<8x32xf32>
      %c0_22 = arith.constant 0 : index
      %c0_23 = arith.constant 0 : index
      %31 = vector.load %arg7[%c0_22, %c0_23] : memref<1x32xf32, #tpu.memory_space<vmem>>, vector<1x32xf32>
      %32 = vector.shape_cast %31 : vector<1x32xf32> to vector<32xf32>
      %33 = arith.mulf %30, %30 : vector<8x32xf32>
      %cst_24 = arith.constant dense<0.000000e+00> : vector<8xf32>
      %34 = vector.multi_reduction <add>, %33, %cst_24 [1] : vector<8x32xf32> to vector<8xf32>
      %35 = vector.shape_cast %34 : vector<8xf32> to vector<8x1xf32>
      %cst_25 = arith.constant 3.200000e+01 : f32
      %36 = vector.broadcast %cst_25 : f32 to vector<8x1xf32>
      %37 = arith.divf %35, %36 : vector<8x1xf32>
      %cst_26 = arith.constant 9.99999974E-6 : f32
      %38 = vector.broadcast %cst_26 : f32 to vector<8x1xf32>
      %39 = arith.addf %37, %38 : vector<8x1xf32>
      %40 = math.rsqrt %39 : vector<8x1xf32>
      %41 = vector.broadcast %40 : vector<8x1xf32> to vector<8x32xf32>
      %42 = arith.mulf %30, %41 : vector<8x32xf32>
      %43 = vector.shape_cast %32 : vector<32xf32> to vector<1x32xf32>
      %44 = vector.broadcast %43 : vector<1x32xf32> to vector<8x32xf32>
      %45 = arith.mulf %42, %44 : vector<8x32xf32>
      %46 = arith.truncf %45 : vector<8x32xf32> to vector<8x32xbf16>
      %c0_27 = arith.constant 0 : index
      %c0_28 = arith.constant 0 : index
      %47 = vector.load %arg8[%c0_27, %c0_28] : memref<32x32xbf16, #tpu.memory_space<vmem>>, vector<32x32xbf16>
      %cst_29 = arith.constant dense<0.000000e+00> : vector<8x32xf32>
      %48 = tpu.matmul %46, %47, %cst_29 {dimension_numbers = #tpu.dot_dimension_numbers<[1], [0], [0], [1], [0, 0, 1, 1], [], []>} : vector<8x32xbf16>, vector<32x32xbf16>, vector<8x32xf32> -> vector<8x32xf32>
      %c0_30 = arith.constant 0 : index
      %c0_31 = arith.constant 0 : index
      %c0_32 = arith.constant 0 : index
      %c0_33 = arith.constant 0 : index
      %49 = vector.load %arg5[%c0_30, %c0_31, %c0_32, %c0_33] : memref<1x1x8x16xbf16, #tpu.memory_space<vmem>>, vector<1x1x8x16xbf16>
      %50 = vector.shape_cast %49 : vector<1x1x8x16xbf16> to vector<8x16xbf16>
      %51 = arith.extf %50 : vector<8x16xbf16> to vector<8x16xf32>
      %c0_34 = arith.constant 0 : index
      %c0_35 = arith.constant 0 : index
      %52 = vector.load %arg11[%c0_34, %c0_35] : memref<1x8xf32, #tpu.memory_space<vmem>>, vector<1x8xf32>
      %53 = vector.shape_cast %52 : vector<1x8xf32> to vector<8xf32>
      %cst_36 = arith.constant 0.353553385 : f32
      %54 = vector.broadcast %cst_36 : f32 to vector<8xf32>
      %55 = arith.mulf %53, %54 : vector<8xf32>
      %c0_37 = arith.constant 0 : index
      %c0_38 = arith.constant 0 : index
      %56 = vector.load %arg20[%c0_37, %c0_38] : memref<16x16xbf16, #tpu.memory_space<vmem>>, vector<16x8xbf16>
      %c0_39 = arith.constant 0 : index
      %c0_40 = arith.constant 0 : index
      %57 = vector.load %arg21[%c0_39, %c0_40] : memref<16x16xbf16, #tpu.memory_space<vmem>>, vector<16x8xbf16>
      %58 = vector.extract_strided_slice %48 {offsets = [0, 0], sizes = [8, 8], strides = [1, 1]} : vector<8x32xf32> to vector<8x8xf32>
      %59 = arith.mulf %58, %58 : vector<8x8xf32>
      %cst_41 = arith.constant dense<0.000000e+00> : vector<8xf32>
      %60 = vector.multi_reduction <add>, %59, %cst_41 [1] : vector<8x8xf32> to vector<8xf32>
      %61 = vector.shape_cast %60 : vector<8xf32> to vector<8x1xf32>
      %cst_42 = arith.constant 8.000000e+00 : f32
      %62 = vector.broadcast %cst_42 : f32 to vector<8x1xf32>
      %63 = arith.divf %61, %62 : vector<8x1xf32>
      %cst_43 = arith.constant 9.99999974E-6 : f32
      %64 = vector.broadcast %cst_43 : f32 to vector<8x1xf32>
      %65 = arith.addf %63, %64 : vector<8x1xf32>
      %66 = math.rsqrt %65 : vector<8x1xf32>
      %67 = vector.broadcast %66 : vector<8x1xf32> to vector<8x8xf32>
      %68 = arith.mulf %58, %67 : vector<8x8xf32>
      %69 = vector.shape_cast %55 : vector<8xf32> to vector<1x8xf32>
      %70 = vector.broadcast %69 : vector<1x8xf32> to vector<8x8xf32>
      %71 = arith.mulf %68, %70 : vector<8x8xf32>
      %72 = arith.truncf %71 : vector<8x8xf32> to vector<8x8xbf16>
      %cst_44 = arith.constant dense<0.000000e+00> : vector<8x16xf32>
      %73 = tpu.matmul %72, %56, %cst_44 {dimension_numbers = #tpu.dot_dimension_numbers<[1], [1], [0], [0], [0, 0, 1, 0], [], []>} : vector<8x8xbf16>, vector<16x8xbf16>, vector<8x16xf32> -> vector<8x16xf32>
      %74 = arith.addf %73, %51 : vector<8x16xf32>
      %cst_45 = arith.constant dense<0xFF800000> : vector<8xf32>
      %75 = vector.multi_reduction <maximumf>, %74, %cst_45 [1] : vector<8x16xf32> to vector<8xf32>
      %76 = vector.shape_cast %75 : vector<8xf32> to vector<8x1xf32>
      %77 = vector.broadcast %76 : vector<8x1xf32> to vector<8x16xf32>
      %78 = arith.subf %74, %77 : vector<8x16xf32>
      %79 = arith.truncf %78 : vector<8x16xf32> to vector<8x16xbf16>
      %80 = math.exp %79 : vector<8x16xbf16>
      %81 = arith.extf %80 : vector<8x16xbf16> to vector<8x16xf32>
      %cst_46 = arith.constant dense<0.000000e+00> : vector<8xf32>
      %82 = vector.multi_reduction <add>, %81, %cst_46 [1] : vector<8x16xf32> to vector<8xf32>
      %83 = vector.shape_cast %82 : vector<8xf32> to vector<8x1xf32>
      %84 = tpu.reciprocal %83 {approx = true} : vector<8x1xf32> -> vector<8x1xf32>
      %cst_47 = arith.constant dense<0.000000e+00> : vector<8x8xf32>
      %85 = tpu.matmul %80, %57, %cst_47 {dimension_numbers = #tpu.dot_dimension_numbers<[1], [0], [0], [1], [0, 0, 1, 1], [], []>} : vector<8x16xbf16>, vector<16x8xbf16>, vector<8x8xf32> -> vector<8x8xf32>
      %86 = vector.broadcast %84 : vector<8x1xf32> to vector<8x8xf32>
      %87 = arith.mulf %85, %86 : vector<8x8xf32>
      %88 = arith.truncf %87 : vector<8x8xf32> to vector<8x8xbf16>
      %c0_48 = arith.constant 0 : index
      %c0_49 = arith.constant 0 : index
      %89 = vector.load %arg22[%c0_48, %c0_49] : memref<8x32xbf16, #tpu.memory_space<vmem>>, vector<8x8xbf16>
      tpu.vector_store %arg22[%c0_48, %c0_49], %88 {strides = array<i32>} : memref<8x32xbf16, #tpu.memory_space<vmem>>, vector<8x8xbf16>,
      %90 = vector.extract_strided_slice %48 {offsets = [0, 8], sizes = [8, 8], strides = [1, 1]} : vector<8x32xf32> to vector<8x8xf32>
      %91 = arith.mulf %90, %90 : vector<8x8xf32>
      %cst_50 = arith.constant dense<0.000000e+00> : vector<8xf32>
      %92 = vector.multi_reduction <add>, %91, %cst_50 [1] : vector<8x8xf32> to vector<8xf32>
      %93 = vector.shape_cast %92 : vector<8xf32> to vector<8x1xf32>
      %cst_51 = arith.constant 8.000000e+00 : f32
      %94 = vector.broadcast %cst_51 : f32 to vector<8x1xf32>
      %95 = arith.divf %93, %94 : vector<8x1xf32>
      %cst_52 = arith.constant 9.99999974E-6 : f32
      %96 = vector.broadcast %cst_52 : f32 to vector<8x1xf32>
      %97 = arith.addf %95, %96 : vector<8x1xf32>
      %98 = math.rsqrt %97 : vector<8x1xf32>
      %99 = vector.broadcast %98 : vector<8x1xf32> to vector<8x8xf32>
      %100 = arith.mulf %90, %99 : vector<8x8xf32>
      %101 = vector.shape_cast %55 : vector<8xf32> to vector<1x8xf32>
      %102 = vector.broadcast %101 : vector<1x8xf32> to vector<8x8xf32>
      %103 = arith.mulf %100, %102 : vector<8x8xf32>
      %104 = arith.truncf %103 : vector<8x8xf32> to vector<8x8xbf16>
      %cst_53 = arith.constant dense<0.000000e+00> : vector<8x16xf32>
      %105 = tpu.matmul %104, %56, %cst_53 {dimension_numbers = #tpu.dot_dimension_numbers<[1], [1], [0], [0], [0, 0, 1, 0], [], []>} : vector<8x8xbf16>, vector<16x8xbf16>, vector<8x16xf32> -> vector<8x16xf32>
      %106 = arith.addf %105, %51 : vector<8x16xf32>
      %cst_54 = arith.constant dense<0xFF800000> : vector<8xf32>
      %107 = vector.multi_reduction <maximumf>, %106, %cst_54 [1] : vector<8x16xf32> to vector<8xf32>
      %108 = vector.shape_cast %107 : vector<8xf32> to vector<8x1xf32>
      %109 = vector.broadcast %108 : vector<8x1xf32> to vector<8x16xf32>
      %110 = arith.subf %106, %109 : vector<8x16xf32>
      %111 = arith.truncf %110 : vector<8x16xf32> to vector<8x16xbf16>
      %112 = math.exp %111 : vector<8x16xbf16>
      %113 = arith.extf %112 : vector<8x16xbf16> to vector<8x16xf32>
      %cst_55 = arith.constant dense<0.000000e+00> : vector<8xf32>
      %114 = vector.multi_reduction <add>, %113, %cst_55 [1] : vector<8x16xf32> to vector<8xf32>
      %115 = vector.shape_cast %114 : vector<8xf32> to vector<8x1xf32>
      %116 = tpu.reciprocal %115 {approx = true} : vector<8x1xf32> -> vector<8x1xf32>
      %cst_56 = arith.constant dense<0.000000e+00> : vector<8x8xf32>
      %117 = tpu.matmul %112, %57, %cst_56 {dimension_numbers = #tpu.dot_dimension_numbers<[1], [0], [0], [1], [0, 0, 1, 1], [], []>} : vector<8x16xbf16>, vector<16x8xbf16>, vector<8x8xf32> -> vector<8x8xf32>
      %118 = vector.broadcast %116 : vector<8x1xf32> to vector<8x8xf32>
      %119 = arith.mulf %117, %118 : vector<8x8xf32>
      %120 = arith.truncf %119 : vector<8x8xf32> to vector<8x8xbf16>
      %c0_57 = arith.constant 0 : index
      %c8 = arith.constant 8 : index
      %121 = vector.load %arg22[%c0_57, %c8] : memref<8x32xbf16, #tpu.memory_space<vmem>>, vector<8x8xbf16>
      tpu.vector_store %arg22[%c0_57, %c8], %120 {strides = array<i32>} : memref<8x32xbf16, #tpu.memory_space<vmem>>, vector<8x8xbf16>,
      %c0_58 = arith.constant 0 : index
      %c8_59 = arith.constant 8 : index
      %122 = vector.load %arg20[%c0_58, %c8_59] : memref<16x16xbf16, #tpu.memory_space<vmem>>, vector<16x8xbf16>
      %c0_60 = arith.constant 0 : index
      %c8_61 = arith.constant 8 : index
      %123 = vector.load %arg21[%c0_60, %c8_61] : memref<16x16xbf16, #tpu.memory_space<vmem>>, vector<16x8xbf16>
      %124 = vector.extract_strided_slice %48 {offsets = [0, 16], sizes = [8, 8], strides = [1, 1]} : vector<8x32xf32> to vector<8x8xf32>
      %125 = arith.mulf %124, %124 : vector<8x8xf32>
      %cst_62 = arith.constant dense<0.000000e+00> : vector<8xf32>
      %126 = vector.multi_reduction <add>, %125, %cst_62 [1] : vector<8x8xf32> to vector<8xf32>
      %127 = vector.shape_cast %126 : vector<8xf32> to vector<8x1xf32>
      %cst_63 = arith.constant 8.000000e+00 : f32
      %128 = vector.broadcast %cst_63 : f32 to vector<8x1xf32>
      %129 = arith.divf %127, %128 : vector<8x1xf32>
      %cst_64 = arith.constant 9.99999974E-6 : f32
      %130 = vector.broadcast %cst_64 : f32 to vector<8x1xf32>
      %131 = arith.addf %129, %130 : vector<8x1xf32>
      %132 = math.rsqrt %131 : vector<8x1xf32>
      %133 = vector.broadcast %132 : vector<8x1xf32> to vector<8x8xf32>
      %134 = arith.mulf %124, %133 : vector<8x8xf32>
      %135 = vector.shape_cast %55 : vector<8xf32> to vector<1x8xf32>
      %136 = vector.broadcast %135 : vector<1x8xf32> to vector<8x8xf32>
      %137 = arith.mulf %134, %136 : vector<8x8xf32>
      %138 = arith.truncf %137 : vector<8x8xf32> to vector<8x8xbf16>
      %cst_65 = arith.constant dense<0.000000e+00> : vector<8x16xf32>
      %139 = tpu.matmul %138, %122, %cst_65 {dimension_numbers = #tpu.dot_dimension_numbers<[1], [1], [0], [0], [0, 0, 1, 0], [], []>} : vector<8x8xbf16>, vector<16x8xbf16>, vector<8x16xf32> -> vector<8x16xf32>
      %140 = arith.addf %139, %51 : vector<8x16xf32>
      %cst_66 = arith.constant dense<0xFF800000> : vector<8xf32>
      %141 = vector.multi_reduction <maximumf>, %140, %cst_66 [1] : vector<8x16xf32> to vector<8xf32>
      %142 = vector.shape_cast %141 : vector<8xf32> to vector<8x1xf32>
      %143 = vector.broadcast %142 : vector<8x1xf32> to vector<8x16xf32>
      %144 = arith.subf %140, %143 : vector<8x16xf32>
      %145 = arith.truncf %144 : vector<8x16xf32> to vector<8x16xbf16>
      %146 = math.exp %145 : vector<8x16xbf16>
      %147 = arith.extf %146 : vector<8x16xbf16> to vector<8x16xf32>
      %cst_67 = arith.constant dense<0.000000e+00> : vector<8xf32>
      %148 = vector.multi_reduction <add>, %147, %cst_67 [1] : vector<8x16xf32> to vector<8xf32>
      %149 = vector.shape_cast %148 : vector<8xf32> to vector<8x1xf32>
      %150 = tpu.reciprocal %149 {approx = true} : vector<8x1xf32> -> vector<8x1xf32>
      %cst_68 = arith.constant dense<0.000000e+00> : vector<8x8xf32>
      %151 = tpu.matmul %146, %123, %cst_68 {dimension_numbers = #tpu.dot_dimension_numbers<[1], [0], [0], [1], [0, 0, 1, 1], [], []>} : vector<8x16xbf16>, vector<16x8xbf16>, vector<8x8xf32> -> vector<8x8xf32>
      %152 = vector.broadcast %150 : vector<8x1xf32> to vector<8x8xf32>
      %153 = arith.mulf %151, %152 : vector<8x8xf32>
      %154 = arith.truncf %153 : vector<8x8xf32> to vector<8x8xbf16>
      %c0_69 = arith.constant 0 : index
      %c16 = arith.constant 16 : index
      %155 = vector.load %arg22[%c0_69, %c16] : memref<8x32xbf16, #tpu.memory_space<vmem>>, vector<8x8xbf16>
      tpu.vector_store %arg22[%c0_69, %c16], %154 {strides = array<i32>} : memref<8x32xbf16, #tpu.memory_space<vmem>>, vector<8x8xbf16>,
      %156 = vector.extract_strided_slice %48 {offsets = [0, 24], sizes = [8, 8], strides = [1, 1]} : vector<8x32xf32> to vector<8x8xf32>
      %157 = arith.mulf %156, %156 : vector<8x8xf32>
      %cst_70 = arith.constant dense<0.000000e+00> : vector<8xf32>
      %158 = vector.multi_reduction <add>, %157, %cst_70 [1] : vector<8x8xf32> to vector<8xf32>
      %159 = vector.shape_cast %158 : vector<8xf32> to vector<8x1xf32>
      %cst_71 = arith.constant 8.000000e+00 : f32
      %160 = vector.broadcast %cst_71 : f32 to vector<8x1xf32>
      %161 = arith.divf %159, %160 : vector<8x1xf32>
      %cst_72 = arith.constant 9.99999974E-6 : f32
      %162 = vector.broadcast %cst_72 : f32 to vector<8x1xf32>
      %163 = arith.addf %161, %162 : vector<8x1xf32>
      %164 = math.rsqrt %163 : vector<8x1xf32>
      %165 = vector.broadcast %164 : vector<8x1xf32> to vector<8x8xf32>
      %166 = arith.mulf %156, %165 : vector<8x8xf32>
      %167 = vector.shape_cast %55 : vector<8xf32> to vector<1x8xf32>
      %168 = vector.broadcast %167 : vector<1x8xf32> to vector<8x8xf32>
      %169 = arith.mulf %166, %168 : vector<8x8xf32>
      %170 = arith.truncf %169 : vector<8x8xf32> to vector<8x8xbf16>
      %cst_73 = arith.constant dense<0.000000e+00> : vector<8x16xf32>
      %171 = tpu.matmul %170, %122, %cst_73 {dimension_numbers = #tpu.dot_dimension_numbers<[1], [1], [0], [0], [0, 0, 1, 0], [], []>} : vector<8x8xbf16>, vector<16x8xbf16>, vector<8x16xf32> -> vector<8x16xf32>
      %172 = arith.addf %171, %51 : vector<8x16xf32>
      %cst_74 = arith.constant dense<0xFF800000> : vector<8xf32>
      %173 = vector.multi_reduction <maximumf>, %172, %cst_74 [1] : vector<8x16xf32> to vector<8xf32>
      %174 = vector.shape_cast %173 : vector<8xf32> to vector<8x1xf32>
      %175 = vector.broadcast %174 : vector<8x1xf32> to vector<8x16xf32>
      %176 = arith.subf %172, %175 : vector<8x16xf32>
      %177 = arith.truncf %176 : vector<8x16xf32> to vector<8x16xbf16>
      %178 = math.exp %177 : vector<8x16xbf16>
      %179 = arith.extf %178 : vector<8x16xbf16> to vector<8x16xf32>
      %cst_75 = arith.constant dense<0.000000e+00> : vector<8xf32>
      %180 = vector.multi_reduction <add>, %179, %cst_75 [1] : vector<8x16xf32> to vector<8xf32>
      %181 = vector.shape_cast %180 : vector<8xf32> to vector<8x1xf32>
      %182 = tpu.reciprocal %181 {approx = true} : vector<8x1xf32> -> vector<8x1xf32>
      %cst_76 = arith.constant dense<0.000000e+00> : vector<8x8xf32>
      %183 = tpu.matmul %178, %123, %cst_76 {dimension_numbers = #tpu.dot_dimension_numbers<[1], [0], [0], [1], [0, 0, 1, 1], [], []>} : vector<8x16xbf16>, vector<16x8xbf16>, vector<8x8xf32> -> vector<8x8xf32>
      %184 = vector.broadcast %182 : vector<8x1xf32> to vector<8x8xf32>
      %185 = arith.mulf %183, %184 : vector<8x8xf32>
      %186 = arith.truncf %185 : vector<8x8xf32> to vector<8x8xbf16>
      %c0_77 = arith.constant 0 : index
      %c24 = arith.constant 24 : index
      %187 = vector.load %arg22[%c0_77, %c24] : memref<8x32xbf16, #tpu.memory_space<vmem>>, vector<8x8xbf16>
      tpu.vector_store %arg22[%c0_77, %c24], %186 {strides = array<i32>} : memref<8x32xbf16, #tpu.memory_space<vmem>>, vector<8x8xbf16>,
      %c0_78 = arith.constant 0 : index
      %c0_79 = arith.constant 0 : index
      %188 = vector.load %arg22[%c0_78, %c0_79] : memref<8x32xbf16, #tpu.memory_space<vmem>>, vector<8x32xbf16>
      %c0_80 = arith.constant 0 : index
      %c0_81 = arith.constant 0 : index
      %189 = vector.load %arg10[%c0_80, %c0_81] : memref<32x32xbf16, #tpu.memory_space<vmem>>, vector<32x32xbf16>
      %cst_82 = arith.constant dense<0.000000e+00> : vector<8x32xf32>
      %190 = tpu.matmul %188, %189, %cst_82 {dimension_numbers = #tpu.dot_dimension_numbers<[1], [0], [0], [1], [0, 0, 1, 1], [], []>} : vector<8x32xbf16>, vector<32x32xbf16>, vector<8x32xf32> -> vector<8x32xf32>
      %c0_83 = arith.constant 0 : index
      %c0_84 = arith.constant 0 : index
      %191 = memref.load %arg13[%c0_83, %c0_84] : memref<1x1xf32, #tpu.memory_space<smem>>
      %192 = vector.broadcast %191 : f32 to vector<8x32xf32>
      %193 = arith.mulf %190, %192 : vector<8x32xf32>
      %194 = arith.addf %30, %193 : vector<8x32xf32>
      %c0_85 = arith.constant 0 : index
      %c0_86 = arith.constant 0 : index
      %195 = vector.load %arg23[%c0_85, %c0_86] : memref<8x32xf32, #tpu.memory_space<vmem>>, vector<8x32xf32>
      tpu.vector_store %arg23[%c0_85, %c0_86], %194 {strides = array<i32>} : memref<8x32xf32, #tpu.memory_space<vmem>>, vector<8x32xf32>,
      %c0_87 = arith.constant 0 : index
      %c0_88 = arith.constant 0 : index
      %196 = vector.load %arg14[%c0_87, %c0_88] : memref<1x32xf32, #tpu.memory_space<vmem>>, vector<1x32xf32>
      %197 = vector.shape_cast %196 : vector<1x32xf32> to vector<32xf32>
      %198 = arith.mulf %194, %194 : vector<8x32xf32>
      %cst_89 = arith.constant dense<0.000000e+00> : vector<8xf32>
      %199 = vector.multi_reduction <add>, %198, %cst_89 [1] : vector<8x32xf32> to vector<8xf32>
      %200 = vector.shape_cast %199 : vector<8xf32> to vector<8x1xf32>
      %cst_90 = arith.constant 3.200000e+01 : f32
      %201 = vector.broadcast %cst_90 : f32 to vector<8x1xf32>
      %202 = arith.divf %200, %201 : vector<8x1xf32>
      %cst_91 = arith.constant 9.99999974E-6 : f32
      %203 = vector.broadcast %cst_91 : f32 to vector<8x1xf32>
      %204 = arith.addf %202, %203 : vector<8x1xf32>
      %205 = math.rsqrt %204 : vector<8x1xf32>
      %206 = vector.broadcast %205 : vector<8x1xf32> to vector<8x32xf32>
      %207 = arith.mulf %194, %206 : vector<8x32xf32>
      %208 = vector.shape_cast %197 : vector<32xf32> to vector<1x32xf32>
      %209 = vector.broadcast %208 : vector<1x32xf32> to vector<8x32xf32>
      %210 = arith.mulf %207, %209 : vector<8x32xf32>
      %211 = arith.truncf %210 : vector<8x32xf32> to vector<8x32xbf16>
      %c0_92 = arith.constant 0 : index
      %c0_93 = arith.constant 0 : index
      %212 = vector.load %arg24[%c0_92, %c0_93] : memref<8x32xbf16, #tpu.memory_space<vmem>>, vector<8x32xbf16>
      tpu.vector_store %arg24[%c0_92, %c0_93], %211 {strides = array<i32>} : memref<8x32xbf16, #tpu.memory_space<vmem>>, vector<8x32xbf16>,
      %cst_94 = arith.constant 0.000000e+00 : f32
      %213 = vector.broadcast %cst_94 : f32 to vector<8x32xf32>
      %c0_95 = arith.constant 0 : index
      %c0_96 = arith.constant 0 : index
      %214 = vector.load %arg25[%c0_95, %c0_96] : memref<8x32xf32, #tpu.memory_space<vmem>>, vector<8x32xf32>
      tpu.vector_store %arg25[%c0_95, %c0_96], %213 {strides = array<i32>} : memref<8x32xf32, #tpu.memory_space<vmem>>, vector<8x32xf32>,
    } else {
    }
    %c0 = arith.constant 0 : index
    %c0_4 = arith.constant 0 : index
    %8 = vector.load %arg24[%c0, %c0_4] : memref<8x32xbf16, #tpu.memory_space<vmem>>, vector<8x32xbf16>
    %c0_5 = arith.constant 0 : index
    %c0_6 = arith.constant 0 : index
    %9 = vector.load %arg15[%c0_5, %c0_6] : memref<32x128xbf16, #tpu.memory_space<vmem>>, vector<32x128xbf16>
    %cst = arith.constant dense<0.000000e+00> : vector<8x128xf32>
    %10 = tpu.matmul %8, %9, %cst {dimension_numbers = #tpu.dot_dimension_numbers<[1], [0], [0], [1], [0, 0, 1, 1], [], []>} : vector<8x32xbf16>, vector<32x128xbf16>, vector<8x128xf32> -> vector<8x128xf32>
    %c0_7 = arith.constant 0 : index
    %c0_8 = arith.constant 0 : index
    %11 = vector.load %arg16[%c0_7, %c0_8] : memref<32x128xbf16, #tpu.memory_space<vmem>>, vector<32x128xbf16>
    %cst_9 = arith.constant dense<0.000000e+00> : vector<8x128xf32>
    %12 = tpu.matmul %8, %11, %cst_9 {dimension_numbers = #tpu.dot_dimension_numbers<[1], [0], [0], [1], [0, 0, 1, 1], [], []>} : vector<8x32xbf16>, vector<32x128xbf16>, vector<8x128xf32> -> vector<8x128xf32>
    %13 = arith.negf %10 : vector<8x128xf32>
    %14 = math.exp %13 : vector<8x128xf32>
    %cst_10 = arith.constant 1.000000e+00 : f32
    %15 = vector.broadcast %cst_10 : f32 to vector<8x128xf32>
    %16 = arith.addf %15, %14 : vector<8x128xf32>
    %17 = arith.divf %15, %16 : vector<8x128xf32>
    %18 = arith.mulf %10, %17 : vector<8x128xf32>
    %19 = arith.mulf %18, %12 : vector<8x128xf32>
    %20 = arith.truncf %19 : vector<8x128xf32> to vector<8x128xbf16>
    %c0_11 = arith.constant 0 : index
    %c0_12 = arith.constant 0 : index
    %21 = vector.load %arg25[%c0_11, %c0_12] : memref<8x32xf32, #tpu.memory_space<vmem>>, vector<8x32xf32>
    %c0_13 = arith.constant 0 : index
    %c0_14 = arith.constant 0 : index
    %22 = vector.load %arg17[%c0_13, %c0_14] : memref<128x32xbf16, #tpu.memory_space<vmem>>, vector<128x32xbf16>
    %cst_15 = arith.constant dense<0.000000e+00> : vector<8x32xf32>
    %23 = tpu.matmul %20, %22, %cst_15 {dimension_numbers = #tpu.dot_dimension_numbers<[1], [0], [0], [1], [0, 0, 1, 1], [], []>} : vector<8x128xbf16>, vector<128x32xbf16>, vector<8x32xf32> -> vector<8x32xf32>
    %24 = arith.addf %21, %23 : vector<8x32xf32>
    %c0_16 = arith.constant 0 : index
    %c0_17 = arith.constant 0 : index
    %25 = vector.load %arg25[%c0_16, %c0_17] : memref<8x32xf32, #tpu.memory_space<vmem>>, vector<8x32xf32>
    tpu.vector_store %arg25[%c0_16, %c0_17], %24 {strides = array<i32>} : memref<8x32xf32, #tpu.memory_space<vmem>>, vector<8x32xf32>,
    %c1_i32 = arith.constant 1 : i32
    %26 = arith.cmpi eq, %arg2, %c1_i32 : i32
    %27 = arith.extui %26 : i1 to i32
    %c0_i32_18 = arith.constant 0 : i32
    %28 = arith.cmpi ne, %27, %c0_i32_18 : i32
    scf.if %28 {
      %c0_19 = arith.constant 0 : index
      %c0_20 = arith.constant 0 : index
      %c0_21 = arith.constant 0 : index
      %c0_22 = arith.constant 0 : index
      %29 = vector.load %arg6[%c0_19, %c0_20, %c0_21, %c0_22] : memref<1x1x8x1xf32, #tpu.memory_space<vmem>>, vector<1x1x8x1xf32>
      %30 = vector.shape_cast %29 : vector<1x1x8x1xf32> to vector<8x1xf32>
      %c0_23 = arith.constant 0 : index
      %c0_24 = arith.constant 0 : index
      %31 = vector.load %arg23[%c0_23, %c0_24] : memref<8x32xf32, #tpu.memory_space<vmem>>, vector<8x32xf32>
      %c0_25 = arith.constant 0 : index
      %c0_26 = arith.constant 0 : index
      %32 = vector.load %arg25[%c0_25, %c0_26] : memref<8x32xf32, #tpu.memory_space<vmem>>, vector<8x32xf32>
      %c0_27 = arith.constant 0 : index
      %c0_28 = arith.constant 0 : index
      %33 = memref.load %arg18[%c0_27, %c0_28] : memref<1x1xf32, #tpu.memory_space<smem>>
      %34 = vector.broadcast %33 : f32 to vector<8x32xf32>
      %35 = arith.mulf %32, %34 : vector<8x32xf32>
      %36 = vector.broadcast %30 : vector<8x1xf32> to vector<8x32xf32>
      %37 = arith.mulf %35, %36 : vector<8x32xf32>
      %38 = arith.addf %31, %37 : vector<8x32xf32>
      %c0_29 = arith.constant 0 : index
      %c0_30 = arith.constant 0 : index
      %c0_31 = arith.constant 0 : index
      %39 = vector.load %arg19[%c0_29, %c0_30, %c0_31] : memref<1x8x32xf32, #tpu.memory_space<vmem>>, vector<1x8x32xf32>
      %40 = vector.shape_cast %39 : vector<1x8x32xf32> to vector<8x32xf32>
      %41 = vector.shape_cast %38 : vector<8x32xf32> to vector<1x8x32xf32>
      tpu.vector_store %arg19[%c0_29, %c0_30, %c0_31], %41 {strides = array<i32>} : memref<1x8x32xf32, #tpu.memory_space<vmem>>, vector<1x8x32xf32>,
    } else {
    }
    return
  }
  func.func @transform_0(%arg0: i32, %arg1: i32, %arg2: i32) -> (i32, i32, i32) {
    %c0_i32 = arith.constant 0 : i32
    %c0_i32_0 = arith.constant 0 : i32
    return %arg0, %arg1, %c0_i32 : i32, i32, i32
  }
  func.func @transform_1(%arg0: i32, %arg1: i32, %arg2: i32) -> (i32, i32, i32) {
    %c0_i32 = arith.constant 0 : i32
    %c0_i32_0 = arith.constant 0 : i32
    %c0_i32_1 = arith.constant 0 : i32
    return %arg0, %c0_i32, %c0_i32_0 : i32, i32, i32
  }
  func.func @transform_2(%arg0: i32, %arg1: i32, %arg2: i32) -> (i32, i32, i32, i32) {
    %c0_i32 = arith.constant 0 : i32
    %c0_i32_0 = arith.constant 0 : i32
    %c0_i32_1 = arith.constant 0 : i32
    return %arg0, %c0_i32, %arg1, %c0_i32_0 : i32, i32, i32, i32
  }
  func.func @transform_3(%arg0: i32, %arg1: i32, %arg2: i32) -> (i32, i32, i32, i32) {
    %c0_i32 = arith.constant 0 : i32
    %c0_i32_0 = arith.constant 0 : i32
    %c0_i32_1 = arith.constant 0 : i32
    return %arg0, %c0_i32, %arg1, %c0_i32_0 : i32, i32, i32, i32
  }
  func.func @transform_4(%arg0: i32, %arg1: i32, %arg2: i32) -> (i32, i32) {
    %c0_i32 = arith.constant 0 : i32
    %c0_i32_0 = arith.constant 0 : i32
    %c0_i32_1 = arith.constant 0 : i32
    return %c0_i32, %c0_i32_0 : i32, i32
  }
  func.func @transform_5(%arg0: i32, %arg1: i32, %arg2: i32) -> (i32, i32) {
    %c0_i32 = arith.constant 0 : i32
    %c0_i32_0 = arith.constant 0 : i32
    %c0_i32_1 = arith.constant 0 : i32
    return %c0_i32, %c0_i32_0 : i32, i32
  }
  func.func @transform_6(%arg0: i32, %arg1: i32, %arg2: i32) -> (i32, i32) {
    %c0_i32 = arith.constant 0 : i32
    %c0_i32_0 = arith.constant 0 : i32
    %c0_i32_1 = arith.constant 0 : i32
    return %c0_i32, %c0_i32_0 : i32, i32
  }
  func.func @transform_7(%arg0: i32, %arg1: i32, %arg2: i32) -> (i32, i32) {
    %c0_i32 = arith.constant 0 : i32
    %c0_i32_0 = arith.constant 0 : i32
    %c0_i32_1 = arith.constant 0 : i32
    return %c0_i32, %c0_i32_0 : i32, i32
  }
  func.func @transform_8(%arg0: i32, %arg1: i32, %arg2: i32) -> (i32, i32) {
    %c0_i32 = arith.constant 0 : i32
    %c0_i32_0 = arith.constant 0 : i32
    %c0_i32_1 = arith.constant 0 : i32
    return %c0_i32, %c0_i32_0 : i32, i32
  }
  func.func @transform_9(%arg0: i32, %arg1: i32, %arg2: i32) -> (i32, i32) {
    %c0_i32 = arith.constant 0 : i32
    %c0_i32_0 = arith.constant 0 : i32
    %c0_i32_1 = arith.constant 0 : i32
    return %c0_i32, %c0_i32_0 : i32, i32
  }
  func.func @transform_10(%arg0: i32, %arg1: i32, %arg2: i32) -> (i32, i32) {
    %c0_i32 = arith.constant 0 : i32
    %c0_i32_0 = arith.constant 0 : i32
    %c0_i32_1 = arith.constant 0 : i32
    return %c0_i32, %c0_i32_0 : i32, i32
  }
  func.func @transform_11(%arg0: i32, %arg1: i32, %arg2: i32) -> (i32, i32) {
    %c0_i32 = arith.constant 0 : i32
    %c0_i32_0 = arith.constant 0 : i32
    %c0_i32_1 = arith.constant 0 : i32
    return %c0_i32, %c0_i32_0 : i32, i32
  }
  func.func @transform_12(%arg0: i32, %arg1: i32, %arg2: i32) -> (i32, i32) {
    %c0_i32 = arith.constant 0 : i32
    %c0_i32_0 = arith.constant 0 : i32
    return %c0_i32, %arg2 : i32, i32
  }
  func.func @transform_13(%arg0: i32, %arg1: i32, %arg2: i32) -> (i32, i32) {
    %c0_i32 = arith.constant 0 : i32
    %c0_i32_0 = arith.constant 0 : i32
    return %c0_i32, %arg2 : i32, i32
  }
  func.func @transform_14(%arg0: i32, %arg1: i32, %arg2: i32) -> (i32, i32) {
    %c0_i32 = arith.constant 0 : i32
    %c0_i32_0 = arith.constant 0 : i32
    return %arg2, %c0_i32 : i32, i32
  }
  func.func @transform_15(%arg0: i32, %arg1: i32, %arg2: i32) -> (i32, i32) {
    %c0_i32 = arith.constant 0 : i32
    %c0_i32_0 = arith.constant 0 : i32
    %c0_i32_1 = arith.constant 0 : i32
    return %c0_i32, %c0_i32_0 : i32, i32
  }
  func.func @transform_16(%arg0: i32, %arg1: i32, %arg2: i32) -> (i32, i32, i32) {
    %c0_i32 = arith.constant 0 : i32
    %c0_i32_0 = arith.constant 0 : i32
    return %arg0, %arg1, %c0_i32 : i32, i32, i32
  }
}

</mosaic_0001>

<llo_original>
// kernel: tpu_custom_call.1
$region0: #{tpu_custom_call.1}
  #allocation0 [shape = 'u32[]', space=smem, size = 0x4, offset = 0x4, fixed_abs, tag = 'smem constant byte address 0x4 - core index']
  #allocation1 [shape = 'u32[72,128]{1,0:T(1,128)}', space=vmem, size = 0x9000, scoped, tag = 'internal scratch']
  #allocation2 [shape = 'bf16[16,16]{1,0:T(8,128)(2,1)}', space=vmem, size = 0x1000, scoped, tag = 'scratch operand']
  #allocation3 [shape = 'bf16[16,16]{1,0:T(8,128)(2,1)}', space=vmem, size = 0x1000, scoped, tag = 'scratch operand']
  #allocation4 [shape = 'bf16[8,32]{1,0:T(8,128)(2,1)}', space=vmem, size = 0x800, scoped, tag = 'scratch operand']
  #allocation5 [shape = 'f32[8,32]{1,0:T(8,128)}', space=vmem, size = 0x1000, scoped, tag = 'scratch operand']
  #allocation6 [shape = 'bf16[8,32]{1,0:T(8,128)(2,1)}', space=vmem, size = 0x800, scoped, tag = 'scratch operand']
  #allocation7 [shape = 'f32[8,32]{1,0:T(8,128)}', space=vmem, size = 0x1000, scoped, tag = 'scratch operand']
  #allocation8 [shape = 'f32[1,1]{1,0:T(1,128)S(6)}', space=smem, size = 0x200, scoped, tag = 'scoped memory for tpu_custom_call.1']
  #allocation9 [shape = 'f32[1,1]{1,0:T(1,128)S(6)}', space=smem, size = 0x200, scoped, tag = 'scoped memory for tpu_custom_call.1']
  %s0 = inlined_call_operand.vmem [shape: f32[2,16,32], index: 0, kind: input, shape index: {}]
  %s1 = inlined_call_operand.vmem [shape: bf16[2,16,32], index: 1, kind: input, shape index: {}]
  %s2 = inlined_call_operand.vmem [shape: bf16[2,1,16,16], index: 2, kind: input, shape index: {}]
  %s3 = inlined_call_operand.vmem [shape: f32[2,1,16,1], index: 3, kind: input, shape index: {}]
  %s4 = inlined_call_operand.vmem [shape: f32[1,32], index: 4, kind: input, shape index: {}]
  %s5 = inlined_call_operand.vmem [shape: bf16[32,32], index: 5, kind: input, shape index: {}]
  %s6 = inlined_call_operand.vmem [shape: bf16[32,32], index: 6, kind: input, shape index: {}]
  %s7 = inlined_call_operand.vmem [shape: bf16[32,32], index: 7, kind: input, shape index: {}]
  %s8 = inlined_call_operand.vmem [shape: f32[1,8], index: 8, kind: input, shape index: {}]
  %s9 = inlined_call_operand.hbm [shape: f32[1,8], index: 9, kind: input, shape index: {}]
  %s10 = inlined_call_operand.<no memory space> [shape: f32[1,1], index: 10, kind: input, shape index: {}]
  %s11 = inlined_call_operand.hbm [shape: f32[1,32], index: 11, kind: input, shape index: {}]
  %s12 = inlined_call_operand.vmem [shape: bf16[32,256], index: 12, kind: input, shape index: {}]
  %s13 = inlined_call_operand.vmem [shape: bf16[32,256], index: 13, kind: input, shape index: {}]
  %s14 = inlined_call_operand.vmem [shape: bf16[256,32], index: 14, kind: input, shape index: {}]
  %s15 = inlined_call_operand.<no memory space> [shape: f32[1,1], index: 15, kind: input, shape index: {}]
  %s16 = inlined_call_operand.hbm [shape: f32[2,16,32], index: 16, kind: output, shape index: {}]
  %s17 = sld [smem:[#allocation0]]
  $region199: #{tpu_custom_call.1} parent=0
    _
  %s19 = ssub.s32 1, %s17
  %s20 = scalar_select 0, %s19, %s17
  %21 = sst [smem:[#allocation8]] %s10
  %22 = sst [smem:[#allocation9]] %s15
  $region1: #{tpu_custom_call.1} parent=0
    #allocation10 [shape = 'u8[512]{0}', space=vmem, size = 0x400, scoped, tag = 'input window, operand 9, single buffered']
    #allocation11 [shape = 's32[2]{0}', space=sflag, size = 0x8, scoped, tag = 'scoped memory for tpu_custom_call.1']
    #allocation12 [shape = 's32[2]{0}', space=sflag, size = 0x8, scoped, tag = 'scoped memory for tpu_custom_call.1']
    #allocation13 [shape = 'u8[512]{0}', space=vmem, size = 0x400, scoped, tag = 'input window, operand 11, single buffered']
    #allocation14 [shape = 's32[1]{0}', space=sflag, size = 0x4, scoped, tag = 'scoped memory for tpu_custom_call.1']
    #allocation15 [shape = 'u8[16384]{0}', space=vmem, size = 0x4000, scoped, tag = 'input window, operand 12']
    #allocation16 [shape = 'u8[16384]{0}', space=vmem, size = 0x4000, scoped, tag = 'input window, operand 13']
    #allocation17 [shape = 'u8[8192]{0}', space=vmem, size = 0x2000, scoped, tag = 'output window, operand 0']
    %23 = vsyncpa [#allocation11], 0
    %24 = vsyncpa [#allocation14], 0
    %25 = vsyncpa [#allocation12], 0
    %s26 = scalar_lea.sflag [#allocation12], 1
    %27 = vsyncpa %s26, 0
    loop: start=0, step=1, limit=10
    $region2: #{tpu_custom_call.1} parent=1 // loop_pre_header
      _
    $region3: #{tpu_custom_call.1} parent=1 // loop_header
      %s29 = sphi 0, %s33
      %p30 = scmp.ge.s32.totalorder %s29, 10
      %s36 = sphi 0, %s55
      %s37 = sphi 0, %s51
      %s38 = sphi 0, %s47
      %s39 = sphi 0, %s36
      %s40 = sphi 0, %s37
      %s41 = sphi 0, %s38
      %s42 = sphi 0, %s39
      %s43 = sphi 0, %s40
      %s44 = sphi 0, %s41
      %s60 = sphi 0, %s62
      %s63 = sphi 0, %s60
      %s64 = sphi 0, %s63
      %s80 = sphi 0, %s64
      %s86 = sphi 0, %s88
      %s89 = sphi 0, %s86
      %s90 = sphi 0, %s89
      %s106 = sphi 0, %s90
      %s114 = sphi 0, %s116
      %s117 = sphi 0, %s114
      %s118 = sphi 0, %s117
      %s134 = sphi 0, %s118
      %s142 = sphi 0, %s144
      %s145 = sphi 0, %s142
      %s146 = sphi 0, %s145
      %s162 = sphi 0, %s146
      %s166 = sphi 0, %s166
      %s168 = sphi 0, %s166
      %s169 = sphi 0, %s168
      %s183 = sphi 0, %s169
      %s187 = sphi 0, %s187
      %s189 = sphi 0, %s187
      %s190 = sphi 0, %s189
      %s204 = sphi 0, %s190
      %s208 = sphi 0, %s208
      %s210 = sphi 0, %s208
      %s211 = sphi 0, %s210
      %s225 = sphi 0, %s211
      %s229 = sphi 0, %s229
      %s231 = sphi 0, %s229
      %s232 = sphi 0, %s231
      %s246 = sphi 0, %s232
      %s250 = sphi 0, %s250
      %s252 = sphi 0, %s250
      %s253 = sphi 0, %s252
      %s267 = sphi 0, %s253
      %s271 = sphi 0, %s271
      %s273 = sphi 0, %s271
      %s274 = sphi 0, %s273
      %s288 = sphi 0, %s274
      %s292 = sphi 0, %s292
      %s294 = sphi 0, %s292
      %s295 = sphi 0, %s294
      %s309 = sphi 0, %s295
      %s313 = sphi 0, %s313
      %s315 = sphi 0, %s313
      %s316 = sphi 0, %s315
      %s330 = sphi 0, %s316
      %s336 = sphi 0, %s338
      %s339 = sphi 0, %s336
      %s340 = sphi 0, %s339
      %s356 = sphi 0, %s340
      %s362 = sphi 0, %s364
      %s365 = sphi 0, %s362
      %s366 = sphi 0, %s365
      %s382 = sphi 0, %s366
      %s388 = sphi 0, %s390
      %s391 = sphi 0, %s388
      %s392 = sphi 0, %s391
      %s408 = sphi 0, %s392
      %s412 = sphi 0, %s412
      %s414 = sphi 0, %s412
      %s415 = sphi 0, %s414
      %s429 = sphi 0, %s415
      %s437 = sphi 0, %s439
      %s440 = sphi 0, %s437
      %s441 = sphi 0, %s440
      %s457 = sphi 0, %s441
    $region4: #{tpu_custom_call.1} parent=1 // loop_header_branch
      %32 = sbr.rel (%p30) target = $region8
    $region5: #{tpu_custom_call.1} parent=1 // loop_body
      %s34 = ssub.s32 %s29, 1
      %s35 = ssub.s32 %s29, 2
      %s45 = sadd.s32 1, %s38
      %p46 = scmp.ge.s32.totalorder %s45, 2
      %s47 = scalar_select %p46, 0, %s45
      %s48 = sadd.s32 1, %s37
      %s49 = scalar_select %p46, %s48, %s37
      %p50 = scmp.ge.s32.totalorder %s49, 2
      %s51 = scalar_select %p50, 0, %s49
      %s52 = sadd.s32 1, %s36
      %s53 = scalar_select %p50, %s52, %s36
      %p54 = scmp.ge.s32.totalorder %s53, 2
      %s55 = scalar_select %p54, 0, %s53
      %s56 = ssub.s32 %s36, %s55
      %s57 = ssub.s32 %s37, %s51
      %s58 = sor.u32 %s56, %s57
      %p59 = scmp.eq.s32.totalorder %s58, 0
      %s61 = sadd.s32 %s60, 1
      %s62 = scalar_select %p59, %s60, %s61
      %p65 = pneg %p59
      %p66 = scmp.eq.s32.totalorder %s29, 7
      %p67 = por %p65, %p66
      %p68 = scmp.ne.s32.totalorder %s60, %s63
      %p69 = scmp.eq.s32.totalorder %s29, 0
      %p70 = por %p68, %p69
      %p71 = scmp.ne.s32.totalorder %s60, %s63
      %p72 = scmp.eq.s32.totalorder %s34, 7
      %p73 = por %p71, %p72
      %p74 = scmp.ne.s32.totalorder %s63, %s64
      %p75 = scmp.eq.s32.totalorder %s34, 0
      %p76 = por %p74, %p75
      %p77 = scmp.ne.s32.totalorder %s63, %s64
      %p78 = scmp.eq.s32.totalorder %s35, 7
      %p79 = por %p77, %p78
      %p81 = scmp.ne.s32.totalorder %s64, %s80
      %p82 = scmp.eq.s32.totalorder %s35, 0
      %p83 = por %p81, %p82
      %s84 = ssub.s32 %s36, %s55
      %p85 = scmp.eq.s32.totalorder %s84, 0
      %s87 = sadd.s32 %s86, 1
      %s88 = scalar_select %p85, %s86, %s87
      %p91 = pneg %p85
      %p92 = scmp.eq.s32.totalorder %s29, 7
      %p93 = por %p91, %p92
      %p94 = scmp.ne.s32.totalorder %s86, %s89
      %p95 = scmp.eq.s32.totalorder %s29, 0
      %p96 = por %p94, %p95
      %p97 = scmp.ne.s32.totalorder %s86, %s89
      %p98 = scmp.eq.s32.totalorder %s34, 7
      %p99 = por %p97, %p98
      %p100 = scmp.ne.s32.totalorder %s89, %s90
      %p101 = scmp.eq.s32.totalorder %s34, 0
      %p102 = por %p100, %p101
      %p103 = scmp.ne.s32.totalorder %s89, %s90
      %p104 = scmp.eq.s32.totalorder %s35, 7
      %p105 = por %p103, %p104
      %p107 = scmp.ne.s32.totalorder %s90, %s106
      %p108 = scmp.eq.s32.totalorder %s35, 0
      %p109 = por %p107, %p108
      %s110 = ssub.s32 %s36, %s55
      %s111 = ssub.s32 %s37, %s51
      %s112 = sor.u32 %s110, %s111
      %p113 = scmp.eq.s32.totalorder %s112, 0
      %s115 = sadd.s32 %s114, 1
      %s116 = scalar_select %p113, %s114, %s115
      %p119 = pneg %p113
      %p120 = scmp.eq.s32.totalorder %s29, 7
      %p121 = por %p119, %p120
      %p122 = scmp.ne.s32.totalorder %s114, %s117
      %p123 = scmp.eq.s32.totalorder %s29, 0
      %p124 = por %p122, %p123
      %p125 = scmp.ne.s32.totalorder %s114, %s117
      %p126 = scmp.eq.s32.totalorder %s34, 7
      %p127 = por %p125, %p126
      %p128 = scmp.ne.s32.totalorder %s117, %s118
      %p129 = scmp.eq.s32.totalorder %s34, 0
      %p130 = por %p128, %p129
      %p131 = scmp.ne.s32.totalorder %s117, %s118
      %p132 = scmp.eq.s32.totalorder %s35, 7
      %p133 = por %p131, %p132
      %p135 = scmp.ne.s32.totalorder %s118, %s134
      %p136 = scmp.eq.s32.totalorder %s35, 0
      %p137 = por %p135, %p136
      %s138 = ssub.s32 %s36, %s55
      %s139 = ssub.s32 %s37, %s51
      %s140 = sor.u32 %s138, %s139
      %p141 = scmp.eq.s32.totalorder %s140, 0
      %s143 = sadd.s32 %s142, 1
      %s144 = scalar_select %p141, %s142, %s143
      %p147 = pneg %p141
      %p148 = scmp.eq.s32.totalorder %s29, 7
      %p149 = por %p147, %p148
      %p150 = scmp.ne.s32.totalorder %s142, %s145
      %p151 = scmp.eq.s32.totalorder %s29, 0
      %p152 = por %p150, %p151
      %p153 = scmp.ne.s32.totalorder %s142, %s145
      %p154 = scmp.eq.s32.totalorder %s34, 7
      %p155 = por %p153, %p154
      %p156 = scmp.ne.s32.totalorder %s145, %s146
      %p157 = scmp.eq.s32.totalorder %s34, 0
      %p158 = por %p156, %p157
      %p159 = scmp.ne.s32.totalorder %s145, %s146
      %p160 = scmp.eq.s32.totalorder %s35, 7
      %p161 = por %p159, %p160
      %p163 = scmp.ne.s32.totalorder %s146, %s162
      %p164 = scmp.eq.s32.totalorder %s35, 0
      %p165 = por %p163, %p164
      %s167 = sadd.s32 %s166, 1
      %p170 = scmp.eq.s32.totalorder %s29, 7
      %p171 = scmp.ne.s32.totalorder %s166, %s168
      %p172 = scmp.eq.s32.totalorder %s29, 0
      %p173 = por %p171, %p172
      %p174 = scmp.ne.s32.totalorder %s166, %s168
      %p175 = scmp.eq.s32.totalorder %s34, 7
      %p176 = por %p174, %p175
      %p177 = scmp.ne.s32.totalorder %s168, %s169
      %p178 = scmp.eq.s32.totalorder %s34, 0
      %p179 = por %p177, %p178
      %p180 = scmp.ne.s32.totalorder %s168, %s169
      %p181 = scmp.eq.s32.totalorder %s35, 7
      %p182 = por %p180, %p181
      %p184 = scmp.ne.s32.totalorder %s169, %s183
      %p185 = scmp.eq.s32.totalorder %s35, 0
      %p186 = por %p184, %p185
      %s188 = sadd.s32 %s187, 1
      %p191 = scmp.eq.s32.totalorder %s29, 7
      %p192 = scmp.ne.s32.totalorder %s187, %s189
      %p193 = scmp.eq.s32.totalorder %s29, 0
      %p194 = por %p192, %p193
      %p195 = scmp.ne.s32.totalorder %s187, %s189
      %p196 = scmp.eq.s32.totalorder %s34, 7
      %p197 = por %p195, %p196
      %p198 = scmp.ne.s32.totalorder %s189, %s190
      %p199 = scmp.eq.s32.totalorder %s34, 0
      %p200 = por %p198, %p199
      %p201 = scmp.ne.s32.totalorder %s189, %s190
      %p202 = scmp.eq.s32.totalorder %s35, 7
      %p203 = por %p201, %p202
      %p205 = scmp.ne.s32.totalorder %s190, %s204
      %p206 = scmp.eq.s32.totalorder %s35, 0
      %p207 = por %p205, %p206
      %s209 = sadd.s32 %s208, 1
      %p212 = scmp.eq.s32.totalorder %s29, 7
      %p213 = scmp.ne.s32.totalorder %s208, %s210
      %p214 = scmp.eq.s32.totalorder %s29, 0
      %p215 = por %p213, %p214
      %p216 = scmp.ne.s32.totalorder %s208, %s210
      %p217 = scmp.eq.s32.totalorder %s34, 7
      %p218 = por %p216, %p217
      %p219 = scmp.ne.s32.totalorder %s210, %s211
      %p220 = scmp.eq.s32.totalorder %s34, 0
      %p221 = por %p219, %p220
      %p222 = scmp.ne.s32.totalorder %s210, %s211
      %p223 = scmp.eq.s32.totalorder %s35, 7
      %p224 = por %p222, %p223
      %p226 = scmp.ne.s32.totalorder %s211, %s225
      %p227 = scmp.eq.s32.totalorder %s35, 0
      %p228 = por %p226, %p227
      %s230 = sadd.s32 %s229, 1
      %p233 = scmp.eq.s32.totalorder %s29, 7
      %p234 = scmp.ne.s32.totalorder %s229, %s231
      %p235 = scmp.eq.s32.totalorder %s29, 0
      %p236 = por %p234, %p235
      %p237 = scmp.ne.s32.totalorder %s229, %s231
      %p238 = scmp.eq.s32.totalorder %s34, 7
      %p239 = por %p237, %p238
      %p240 = scmp.ne.s32.totalorder %s231, %s232
      %p241 = scmp.eq.s32.totalorder %s34, 0
      %p242 = por %p240, %p241
      %p243 = scmp.ne.s32.totalorder %s231, %s232
      %p244 = scmp.eq.s32.totalorder %s35, 7
      %p245 = por %p243, %p244
      %p247 = scmp.ne.s32.totalorder %s232, %s246
      %p248 = scmp.eq.s32.totalorder %s35, 0
      %p249 = por %p247, %p248
      %s251 = sadd.s32 %s250, 1
      %p254 = scmp.eq.s32.totalorder %s29, 7
      %p255 = scmp.ne.s32.totalorder %s250, %s252
      %p256 = scmp.eq.s32.totalorder %s29, 0
      %p257 = por %p255, %p256
      %p258 = scmp.ne.s32.totalorder %s250, %s252
      %p259 = scmp.eq.s32.totalorder %s34, 7
      %p260 = por %p258, %p259
      %p261 = scmp.ne.s32.totalorder %s252, %s253
      %p262 = scmp.eq.s32.totalorder %s34, 0
      %p263 = por %p261, %p262
      %p264 = scmp.ne.s32.totalorder %s252, %s253
      %p265 = scmp.eq.s32.totalorder %s35, 7
      %p266 = por %p264, %p265
      %p268 = scmp.ne.s32.totalorder %s253, %s267
      %p269 = scmp.eq.s32.totalorder %s35, 0
      %p270 = por %p268, %p269
      %s272 = sadd.s32 %s271, 1
      %p275 = scmp.eq.s32.totalorder %s29, 7
      %p276 = scmp.ne.s32.totalorder %s271, %s273
      %p277 = scmp.eq.s32.totalorder %s29, 0
      %p278 = por %p276, %p277
      %p279 = scmp.ne.s32.totalorder %s271, %s273
      %p280 = scmp.eq.s32.totalorder %s34, 7
      %p281 = por %p279, %p280
      %p282 = scmp.ne.s32.totalorder %s273, %s274
      %p283 = scmp.eq.s32.totalorder %s34, 0
      %p284 = por %p282, %p283
      %p285 = scmp.ne.s32.totalorder %s273, %s274
      %p286 = scmp.eq.s32.totalorder %s35, 7
      %p287 = por %p285, %p286
      %p289 = scmp.ne.s32.totalorder %s274, %s288
      %p290 = scmp.eq.s32.totalorder %s35, 0
      %p291 = por %p289, %p290
      %s293 = sadd.s32 %s292, 1
      %p296 = scmp.eq.s32.totalorder %s29, 7
      %p297 = scmp.ne.s32.totalorder %s292, %s294
      %p298 = scmp.eq.s32.totalorder %s29, 0
      %p299 = por %p297, %p298
      %p300 = scmp.ne.s32.totalorder %s292, %s294
      %p301 = scmp.eq.s32.totalorder %s34, 7
      %p302 = por %p300, %p301
      %p303 = scmp.ne.s32.totalorder %s294, %s295
      %p304 = scmp.eq.s32.totalorder %s34, 0
      %p305 = por %p303, %p304
      %p306 = scmp.ne.s32.totalorder %s294, %s295
      %p307 = scmp.eq.s32.totalorder %s35, 7
      %p308 = por %p306, %p307
      %p310 = scmp.ne.s32.totalorder %s295, %s309
      %p311 = scmp.eq.s32.totalorder %s35, 0
      %p312 = por %p310, %p311
      %s314 = sadd.s32 %s313, 1
      %p317 = scmp.eq.s32.totalorder %s29, 7
      %p318 = scmp.ne.s32.totalorder %s313, %s315
      %p319 = scmp.eq.s32.totalorder %s29, 0
      %p320 = por %p318, %p319
      %p321 = scmp.ne.s32.totalorder %s313, %s315
      %p322 = scmp.eq.s32.totalorder %s34, 7
      %p323 = por %p321, %p322
      %p324 = scmp.ne.s32.totalorder %s315, %s316
      %p325 = scmp.eq.s32.totalorder %s34, 0
      %p326 = por %p324, %p325
      %p327 = scmp.ne.s32.totalorder %s315, %s316
      %p328 = scmp.eq.s32.totalorder %s35, 7
      %p329 = por %p327, %p328
      %p331 = scmp.ne.s32.totalorder %s316, %s330
      %p332 = scmp.eq.s32.totalorder %s35, 0
      %p333 = por %p331, %p332
      %s334 = ssub.s32 %s38, %s47
      %p335 = scmp.eq.s32.totalorder %s334, 0
      %s337 = sadd.s32 %s336, 1
      %s338 = scalar_select %p335, %s336, %s337
      %p341 = pneg %p335
      %p342 = scmp.eq.s32.totalorder %s29, 7
      %p343 = por %p341, %p342
      %p344 = scmp.ne.s32.totalorder %s336, %s339
      %p345 = scmp.eq.s32.totalorder %s29, 0
      %p346 = por %p344, %p345
      %p347 = scmp.ne.s32.totalorder %s336, %s339
      %p348 = scmp.eq.s32.totalorder %s34, 7
      %p349 = por %p347, %p348
      %p350 = scmp.ne.s32.totalorder %s339, %s340
      %p351 = scmp.eq.s32.totalorder %s34, 0
      %p352 = por %p350, %p351
      %p353 = scmp.ne.s32.totalorder %s339, %s340
      %p354 = scmp.eq.s32.totalorder %s35, 7
      %p355 = por %p353, %p354
      %p357 = scmp.ne.s32.totalorder %s340, %s356
      %p358 = scmp.eq.s32.totalorder %s35, 0
      %p359 = por %p357, %p358
      %s360 = ssub.s32 %s38, %s47
      %p361 = scmp.eq.s32.totalorder %s360, 0
      %s363 = sadd.s32 %s362, 1
      %s364 = scalar_select %p361, %s362, %s363
      %p367 = pneg %p361
      %p368 = scmp.eq.s32.totalorder %s29, 7
      %p369 = por %p367, %p368
      %p370 = scmp.ne.s32.totalorder %s362, %s365
      %p371 = scmp.eq.s32.totalorder %s29, 0
      %p372 = por %p370, %p371
      %p373 = scmp.ne.s32.totalorder %s362, %s365
      %p374 = scmp.eq.s32.totalorder %s34, 7
      %p375 = por %p373, %p374
      %p376 = scmp.ne.s32.totalorder %s365, %s366
      %p377 = scmp.eq.s32.totalorder %s34, 0
      %p378 = por %p376, %p377
      %p379 = scmp.ne.s32.totalorder %s365, %s366
      %p380 = scmp.eq.s32.totalorder %s35, 7
      %p381 = por %p379, %p380
      %p383 = scmp.ne.s32.totalorder %s366, %s382
      %p384 = scmp.eq.s32.totalorder %s35, 0
      %p385 = por %p383, %p384
      %s386 = ssub.s32 %s38, %s47
      %p387 = scmp.eq.s32.totalorder %s386, 0
      %s389 = sadd.s32 %s388, 1
      %s390 = scalar_select %p387, %s388, %s389
      %p393 = pneg %p387
      %p394 = scmp.eq.s32.totalorder %s29, 7
      %p395 = por %p393, %p394
      %p396 = scmp.ne.s32.totalorder %s388, %s391
      %p397 = scmp.eq.s32.totalorder %s29, 0
      %p398 = por %p396, %p397
      %p399 = scmp.ne.s32.totalorder %s388, %s391
      %p400 = scmp.eq.s32.totalorder %s34, 7
      %p401 = por %p399, %p400
      %p402 = scmp.ne.s32.totalorder %s391, %s392
      %p403 = scmp.eq.s32.totalorder %s34, 0
      %p404 = por %p402, %p403
      %p405 = scmp.ne.s32.totalorder %s391, %s392
      %p406 = scmp.eq.s32.totalorder %s35, 7
      %p407 = por %p405, %p406
      %p409 = scmp.ne.s32.totalorder %s392, %s408
      %p410 = scmp.eq.s32.totalorder %s35, 0
      %p411 = por %p409, %p410
      %s413 = sadd.s32 %s412, 1
      %p416 = scmp.eq.s32.totalorder %s29, 7
      %p417 = scmp.ne.s32.totalorder %s412, %s414
      %p418 = scmp.eq.s32.totalorder %s29, 0
      %p419 = por %p417, %p418
      %p420 = scmp.ne.s32.totalorder %s412, %s414
      %p421 = scmp.eq.s32.totalorder %s34, 7
      %p422 = por %p420, %p421
      %p423 = scmp.ne.s32.totalorder %s414, %s415
      %p424 = scmp.eq.s32.totalorder %s34, 0
      %p425 = por %p423, %p424
      %p426 = scmp.ne.s32.totalorder %s414, %s415
      %p427 = scmp.eq.s32.totalorder %s35, 7
      %p428 = por %p426, %p427
      %p430 = scmp.ne.s32.totalorder %s415, %s429
      %p431 = scmp.eq.s32.totalorder %s35, 0
      %p432 = por %p430, %p431
      %s433 = ssub.s32 %s36, %s55
      %s434 = ssub.s32 %s37, %s51
      %s435 = sor.u32 %s433, %s434
      %p436 = scmp.eq.s32.totalorder %s435, 0
      %s438 = sadd.s32 %s437, 1
      %s439 = scalar_select %p436, %s437, %s438
      %p442 = pneg %p436
      %p443 = scmp.eq.s32.totalorder %s29, 7
      %p444 = por %p442, %p443
      %p445 = scmp.ne.s32.totalorder %s437, %s440
      %p446 = scmp.eq.s32.totalorder %s29, 0
      %p447 = por %p445, %p446
      %p448 = scmp.ne.s32.totalorder %s437, %s440
      %p449 = scmp.eq.s32.totalorder %s34, 7
      %p450 = por %p448, %p449
      %p451 = scmp.ne.s32.totalorder %s440, %s441
      %p452 = scmp.eq.s32.totalorder %s34, 0
      %p453 = por %p451, %p452
      %p454 = scmp.ne.s32.totalorder %s440, %s441
      %p455 = scmp.eq.s32.totalorder %s35, 7
      %p456 = por %p454, %p455
      %p458 = scmp.ne.s32.totalorder %s441, %s457
      %p459 = scmp.eq.s32.totalorder %s35, 0
      %p460 = por %p458, %p459
      %p461 = scmp.le.s32.totalorder 1, %s29
      %p462 = scmp.lt.s32.totalorder %s29, 9
      %p463 = pnand %p461, %p462
      %p464 = pneg %p463
      // Predicated region
      $region9: #{tpu_custom_call.1} parent=5 // pred_check
        _
      $region10: #{tpu_custom_call.1} parent=5 // pred_check_branch
        %466 = sbr.rel (%p463) target = $region12
      $region11: #{tpu_custom_call.1} parent=5 // pred_region
        %s467 = ssub.s32 %s29, 1
        // Predicated region
        $region13: #{tpu_custom_call.1} parent=11 // pred_check
          %p468 = pneg %p179
        $region14: #{tpu_custom_call.1} parent=11 // pred_check_branch
          %470 = sbr.rel (%p468) target = $region16
        $region15: #{tpu_custom_call.1} parent=11 // pred_region
          _
        $region16: #{tpu_custom_call.1} parent=11 // pred_fallthru
          _
        // Predicated region
        $region17: #{tpu_custom_call.1} parent=11 // pred_check
          %p471 = pneg %p200
        $region18: #{tpu_custom_call.1} parent=11 // pred_check_branch
          %473 = sbr.rel (%p471) target = $region20
        $region19: #{tpu_custom_call.1} parent=11 // pred_region
          _
        $region20: #{tpu_custom_call.1} parent=11 // pred_fallthru
          _
        // Predicated region
        $region21: #{tpu_custom_call.1} parent=11 // pred_check
          %p474 = pneg %p221
        $region22: #{tpu_custom_call.1} parent=11 // pred_check_branch
          %476 = sbr.rel (%p474) target = $region24
        $region23: #{tpu_custom_call.1} parent=11 // pred_region
          _
        $region24: #{tpu_custom_call.1} parent=11 // pred_fallthru
          _
        // Predicated region
        $region25: #{tpu_custom_call.1} parent=11 // pred_check
          %p477 = pneg %p242
        $region26: #{tpu_custom_call.1} parent=11 // pred_check_branch
          %479 = sbr.rel (%p477) target = $region28
        $region27: #{tpu_custom_call.1} parent=11 // pred_region
          _
        $region28: #{tpu_custom_call.1} parent=11 // pred_fallthru
          _
        // Predicated region
        $region29: #{tpu_custom_call.1} parent=11 // pred_check
          %p480 = pneg %p263
        $region30: #{tpu_custom_call.1} parent=11 // pred_check_branch
          %482 = sbr.rel (%p480) target = $region32
        $region31: #{tpu_custom_call.1} parent=11 // pred_region
          _
        $region32: #{tpu_custom_call.1} parent=11 // pred_fallthru
          _
        // Predicated region
        $region33: #{tpu_custom_call.1} parent=11 // pred_check
          %p483 = pneg %p284
        $region34: #{tpu_custom_call.1} parent=11 // pred_check_branch
          %485 = sbr.rel (%p483) target = $region36
        $region35: #{tpu_custom_call.1} parent=11 // pred_region
          %487 = vsyncadd [#allocation11], 0
          %s489 = sshll.u32 %s9, 4
          %s490 = int_to_ptr.hbm [resolvable:$true] %s489
          %s491 = sshll.u32 [#allocation10], 4
          %s492 = int_to_ptr.vmem [resolvable:$true] %s491
          %494 = dma.hbm_to_vmem [thread:$0]  %s490, 16, %s492, [#allocation11]
        $region36: #{tpu_custom_call.1} parent=11 // pred_fallthru
          _
        // Predicated region
        $region37: #{tpu_custom_call.1} parent=11 // pred_check
          %p495 = pneg %p305
        $region38: #{tpu_custom_call.1} parent=11 // pred_check_branch
          %497 = sbr.rel (%p495) target = $region40
        $region39: #{tpu_custom_call.1} parent=11 // pred_region
          _
        $region40: #{tpu_custom_call.1} parent=11 // pred_fallthru
          _
        // Predicated region
        $region41: #{tpu_custom_call.1} parent=11 // pred_check
          %p498 = pneg %p326
        $region42: #{tpu_custom_call.1} parent=11 // pred_check_branch
          %500 = sbr.rel (%p498) target = $region44
        $region43: #{tpu_custom_call.1} parent=11 // pred_region
          %502 = vsyncadd [#allocation14], 0
          %s504 = sshll.u32 %s11, 4
          %s505 = int_to_ptr.hbm [resolvable:$true] %s504
          %s506 = sshll.u32 [#allocation13], 4
          %s507 = int_to_ptr.vmem [resolvable:$true] %s506
          %509 = dma.hbm_to_vmem [thread:$0]  %s505, 16, %s507, [#allocation14]
        $region44: #{tpu_custom_call.1} parent=11 // pred_fallthru
          _
        // Predicated region
        $region45: #{tpu_custom_call.1} parent=11 // pred_check
          %p510 = pneg %p425
        $region46: #{tpu_custom_call.1} parent=11 // pred_check_branch
          %512 = sbr.rel (%p510) target = $region48
        $region47: #{tpu_custom_call.1} parent=11 // pred_region
          _
        $region48: #{tpu_custom_call.1} parent=11 // pred_fallthru
          _
      $region12: #{tpu_custom_call.1} parent=5 // pred_fallthru
        _
      %p513 = scmp.lt.s32.totalorder %s29, 8
      // Predicated region
      $region49: #{tpu_custom_call.1} parent=5 // pred_check
        %p514 = pneg %p513
      $region50: #{tpu_custom_call.1} parent=5 // pred_check_branch
        %516 = sbr.rel (%p514) target = $region52
      $region51: #{tpu_custom_call.1} parent=5 // pred_region
        // Predicated region
        $region53: #{tpu_custom_call.1} parent=51 // pred_check
          %p517 = pneg %p70
        $region54: #{tpu_custom_call.1} parent=51 // pred_check_branch
          %519 = sbr.rel (%p517) target = $region56
        $region55: #{tpu_custom_call.1} parent=51 // pred_region
          %p520 = scmp.lt.s32.totalorder %s36, 1
          %s521 = scalar_select %p520, %s36, 1
          %p522 = scmp.lt.s32.totalorder %s37, 1
          %s523 = scalar_select %p522, %s37, 1
          %s524 = smul.addr %s521, 2
          %s525 = sadd.s32 %s523, %s524
          %s526 = smul.addr %s525, 8
          %s527 = scalar_lea.vmem %s0, %s526
        $region56: #{tpu_custom_call.1} parent=51 // pred_fallthru
          _
        // Predicated region
        $region57: #{tpu_custom_call.1} parent=51 // pred_check
          %p528 = pneg %p96
        $region58: #{tpu_custom_call.1} parent=51 // pred_check_branch
          %530 = sbr.rel (%p528) target = $region60
        $region59: #{tpu_custom_call.1} parent=51 // pred_region
          %p531 = scmp.lt.s32.totalorder %s36, 1
          %s532 = scalar_select %p531, %s36, 1
          %s533 = smul.addr %s532, 2
          %s534 = smul.addr %s533, 4
          %s535 = scalar_lea.vmem %s1, %s534
        $region60: #{tpu_custom_call.1} parent=51 // pred_fallthru
          _
        // Predicated region
        $region61: #{tpu_custom_call.1} parent=51 // pred_check
          %p536 = pneg %p124
        $region62: #{tpu_custom_call.1} parent=51 // pred_check_branch
          %538 = sbr.rel (%p536) target = $region64
        $region63: #{tpu_custom_call.1} parent=51 // pred_region
          %p539 = scmp.lt.s32.totalorder %s36, 1
          %s540 = scalar_select %p539, %s36, 1
          %p541 = scmp.lt.s32.totalorder %s37, 1
          %s542 = scalar_select %p541, %s37, 1
          %s543 = smul.addr %s540, 2
          %s544 = sadd.s32 %s542, %s543
          %s545 = smul.addr %s544, 4
          %s546 = scalar_lea.vmem %s2, %s545
        $region64: #{tpu_custom_call.1} parent=51 // pred_fallthru
          _
        // Predicated region
        $region65: #{tpu_custom_call.1} parent=51 // pred_check
          %p547 = pneg %p152
        $region66: #{tpu_custom_call.1} parent=51 // pred_check_branch
          %549 = sbr.rel (%p547) target = $region68
        $region67: #{tpu_custom_call.1} parent=51 // pred_region
          %p550 = scmp.lt.s32.totalorder %s36, 1
          %s551 = scalar_select %p550, %s36, 1
          %p552 = scmp.lt.s32.totalorder %s37, 1
          %s553 = scalar_select %p552, %s37, 1
          %s554 = smul.addr %s551, 2
          %s555 = sadd.s32 %s553, %s554
          %s556 = smul.addr %s555, 8
          %s557 = scalar_lea.vmem %s3, %s556
        $region68: #{tpu_custom_call.1} parent=51 // pred_fallthru
          _
        // Predicated region
        $region69: #{tpu_custom_call.1} parent=51 // pred_check
          %p558 = pneg %p346
        $region70: #{tpu_custom_call.1} parent=51 // pred_check_branch
          %560 = sbr.rel (%p558) target = $region72
        $region71: #{tpu_custom_call.1} parent=51 // pred_region
          %s561 = sand.u32 %s336, 1
          %s562 = sand.u32 %s336, 1
          %s563 = smul.addr %s562, 16
          %s564 = scalar_lea.vmem [#allocation15], %s563
          %s565 = smul.addr %s38, 4
          %s566 = scalar_lea.vmem %s12, %s565
          // Predicated region
          $region73: #{tpu_custom_call.1} parent=71 // pred_check
            _
          $region74: #{tpu_custom_call.1} parent=71 // pred_check_branch
            %568 = sbr.rel (0) target = $region76
          $region75: #{tpu_custom_call.1} parent=71 // pred_region
            // Predicated region
            $region77: #{tpu_custom_call.1} parent=75 // pred_check
              _
            $region78: #{tpu_custom_call.1} parent=75 // pred_check_branch
              %570 = sbr.rel target = $region80
            $region79: #{tpu_custom_call.1} parent=75 // pred_region
              // Predicated region
              $region92: #{tpu_custom_call.1} parent=79 // pred_check
                _
              $region93: #{tpu_custom_call.1} parent=79 // pred_check_branch
                %592 = sbr.rel (0) target = $region95
              $region94: #{tpu_custom_call.1} parent=79 // pred_region
                loop: start=0, step=1, limit=1
                $region96: #{tpu_custom_call.1} parent=94 // loop_pre_header
                  _
                $region97: #{tpu_custom_call.1} parent=94 // loop_header
                  %s594 = sphi 0, %s598
                  %p595 = scmp.ge.s32.totalorder %s594, 1
                  %s599 = sphi %s566, %s566
                  %s600 = sphi %s564, %s564
                $region98: #{tpu_custom_call.1} parent=94 // loop_header_branch
                  %597 = sbr.rel (%p595) target = $region102
                $region99: #{tpu_custom_call.1} parent=94 // loop_body
                  _
                $region100: #{tpu_custom_call.1} parent=94 // loop_footer
                  %s598 = sadd.s32 1, %s594
                $region101: #{tpu_custom_call.1} parent=94 // loop_footer_branch
                  %593 = sbr.rel target = $region97
                $region102: #{tpu_custom_call.1} parent=94 // loop_exit
                  _
                %s602 = ssub.s32 16, 1
                loop: start=0, step=1, limit=1
                $region103: #{tpu_custom_call.1} parent=94 // loop_pre_header
                  _
                $region104: #{tpu_custom_call.1} parent=94 // loop_header
                  %s604 = sphi 0, %s608
                  %p605 = scmp.ge.s32.totalorder %s604, 1
                  %s609 = sphi %s566, %s566
                  %s610 = sphi %s564, %s564
                $region105: #{tpu_custom_call.1} parent=94 // loop_header_branch
                  %607 = sbr.rel (%p605) target = $region109
                $region106: #{tpu_custom_call.1} parent=94 // loop_body
                  %v611 = vld [vmem:[%s609] sm:%s602]
                  %612 = vst [vmem:[%s610] sm:%s602] %v611
                  %v613 = vld [vmem:[%s609 + $0x8] sm:%s602]
                  %614 = vst [vmem:[%s610 + $0x4] sm:%s602] %v613
                  %v615 = vld [vmem:[%s609 + $0x10] sm:%s602]
                  %616 = vst [vmem:[%s610 + $0x8] sm:%s602] %v615
                  %v617 = vld [vmem:[%s609 + $0x18] sm:%s602]
                  %618 = vst [vmem:[%s610 + $0xc] sm:%s602] %v617
                $region107: #{tpu_custom_call.1} parent=94 // loop_footer
                  %s608 = sadd.s32 1, %s604
                $region108: #{tpu_custom_call.1} parent=94 // loop_footer_branch
                  %603 = sbr.rel target = $region104
                $region109: #{tpu_custom_call.1} parent=94 // loop_exit
                  _
              $region95: #{tpu_custom_call.1} parent=79 // pred_fallthru
                _
            $region80: #{tpu_custom_call.1} parent=75 // pred_fallthru
              _
            // Predicated region
            $region81: #{tpu_custom_call.1} parent=75 // pred_check
              _
            $region82: #{tpu_custom_call.1} parent=75 // pred_check_branch
              %572 = sbr.rel (0) target = $region84
            $region83: #{tpu_custom_call.1} parent=75 // pred_region
              %s574 = ssub.s32 16, 1
              loop: start=0, step=1, limit=1
              $region85: #{tpu_custom_call.1} parent=83 // loop_pre_header
                _
              $region86: #{tpu_custom_call.1} parent=83 // loop_header
                %s576 = sphi 0, %s580
                %p577 = scmp.ge.s32.totalorder %s576, 1
                %s581 = sphi %s566, %s566
                %s582 = sphi %s564, %s564
              $region87: #{tpu_custom_call.1} parent=83 // loop_header_branch
                %579 = sbr.rel (%p577) target = $region91
              $region88: #{tpu_custom_call.1} parent=83 // loop_body
                %v583 = vld [vmem:[%s581] sm:%s574]
                %584 = vst [vmem:[%s582] sm:%s574] %v583
                %v585 = vld [vmem:[%s581 + $0x8] sm:%s574]
                %586 = vst [vmem:[%s582 + $0x4] sm:%s574] %v585
                %v587 = vld [vmem:[%s581 + $0x10] sm:%s574]
                %588 = vst [vmem:[%s582 + $0x8] sm:%s574] %v587
                %v589 = vld [vmem:[%s581 + $0x18] sm:%s574]
                %590 = vst [vmem:[%s582 + $0xc] sm:%s574] %v589
              $region89: #{tpu_custom_call.1} parent=83 // loop_footer
                %s580 = sadd.s32 1, %s576
              $region90: #{tpu_custom_call.1} parent=83 // loop_footer_branch
                %575 = sbr.rel target = $region86
              $region91: #{tpu_custom_call.1} parent=83 // loop_exit
                _
            $region84: #{tpu_custom_call.1} parent=75 // pred_fallthru
              _
          $region76: #{tpu_custom_call.1} parent=71 // pred_fallthru
            _
          %619 = vnop
        $region72: #{tpu_custom_call.1} parent=51 // pred_fallthru
          _
        // Predicated region
        $region110: #{tpu_custom_call.1} parent=51 // pred_check
          %p620 = pneg %p372
        $region111: #{tpu_custom_call.1} parent=51 // pred_check_branch
          %622 = sbr.rel (%p620) target = $region113
        $region112: #{tpu_custom_call.1} parent=51 // pred_region
          %s623 = sand.u32 %s362, 1
          %s624 = sand.u32 %s362, 1
          %s625 = smul.addr %s624, 16
          %s626 = scalar_lea.vmem [#allocation16], %s625
          %s627 = smul.addr %s38, 4
          %s628 = scalar_lea.vmem %s13, %s627
          // Predicated region
          $region114: #{tpu_custom_call.1} parent=112 // pred_check
            _
          $region115: #{tpu_custom_call.1} parent=112 // pred_check_branch
            %630 = sbr.rel (0) target = $region117
          $region116: #{tpu_custom_call.1} parent=112 // pred_region
            // Predicated region
            $region118: #{tpu_custom_call.1} parent=116 // pred_check
              _
            $region119: #{tpu_custom_call.1} parent=116 // pred_check_branch
              %632 = sbr.rel target = $region121
            $region120: #{tpu_custom_call.1} parent=116 // pred_region
              // Predicated region
              $region133: #{tpu_custom_call.1} parent=120 // pred_check
                _
              $region134: #{tpu_custom_call.1} parent=120 // pred_check_branch
                %654 = sbr.rel (0) target = $region136
              $region135: #{tpu_custom_call.1} parent=120 // pred_region
                loop: start=0, step=1, limit=1
                $region137: #{tpu_custom_call.1} parent=135 // loop_pre_header
                  _
                $region138: #{tpu_custom_call.1} parent=135 // loop_header
                  %s656 = sphi 0, %s660
                  %p657 = scmp.ge.s32.totalorder %s656, 1
                  %s661 = sphi %s628, %s628
                  %s662 = sphi %s626, %s626
                $region139: #{tpu_custom_call.1} parent=135 // loop_header_branch
                  %659 = sbr.rel (%p657) target = $region143
                $region140: #{tpu_custom_call.1} parent=135 // loop_body
                  _
                $region141: #{tpu_custom_call.1} parent=135 // loop_footer
                  %s660 = sadd.s32 1, %s656
                $region142: #{tpu_custom_call.1} parent=135 // loop_footer_branch
                  %655 = sbr.rel target = $region138
                $region143: #{tpu_custom_call.1} parent=135 // loop_exit
                  _
                %s664 = ssub.s32 16, 1
                loop: start=0, step=1, limit=1
                $region144: #{tpu_custom_call.1} parent=135 // loop_pre_header
                  _
                $region145: #{tpu_custom_call.1} parent=135 // loop_header
                  %s666 = sphi 0, %s670
                  %p667 = scmp.ge.s32.totalorder %s666, 1
                  %s671 = sphi %s628, %s628
                  %s672 = sphi %s626, %s626
                $region146: #{tpu_custom_call.1} parent=135 // loop_header_branch
                  %669 = sbr.rel (%p667) target = $region150
                $region147: #{tpu_custom_call.1} parent=135 // loop_body
                  %v673 = vld [vmem:[%s671] sm:%s664]
                  %674 = vst [vmem:[%s672] sm:%s664] %v673
                  %v675 = vld [vmem:[%s671 + $0x8] sm:%s664]
                  %676 = vst [vmem:[%s672 + $0x4] sm:%s664] %v675
                  %v677 = vld [vmem:[%s671 + $0x10] sm:%s664]
                  %678 = vst [vmem:[%s672 + $0x8] sm:%s664] %v677
                  %v679 = vld [vmem:[%s671 + $0x18] sm:%s664]
                  %680 = vst [vmem:[%s672 + $0xc] sm:%s664] %v679
                $region148: #{tpu_custom_call.1} parent=135 // loop_footer
                  %s670 = sadd.s32 1, %s666
                $region149: #{tpu_custom_call.1} parent=135 // loop_footer_branch
                  %665 = sbr.rel target = $region145
                $region150: #{tpu_custom_call.1} parent=135 // loop_exit
                  _
              $region136: #{tpu_custom_call.1} parent=120 // pred_fallthru
                _
            $region121: #{tpu_custom_call.1} parent=116 // pred_fallthru
              _
            // Predicated region
            $region122: #{tpu_custom_call.1} parent=116 // pred_check
              _
            $region123: #{tpu_custom_call.1} parent=116 // pred_check_branch
              %634 = sbr.rel (0) target = $region125
            $region124: #{tpu_custom_call.1} parent=116 // pred_region
              %s636 = ssub.s32 16, 1
              loop: start=0, step=1, limit=1
              $region126: #{tpu_custom_call.1} parent=124 // loop_pre_header
                _
              $region127: #{tpu_custom_call.1} parent=124 // loop_header
                %s638 = sphi 0, %s642
                %p639 = scmp.ge.s32.totalorder %s638, 1
                %s643 = sphi %s628, %s628
                %s644 = sphi %s626, %s626
              $region128: #{tpu_custom_call.1} parent=124 // loop_header_branch
                %641 = sbr.rel (%p639) target = $region132
              $region129: #{tpu_custom_call.1} parent=124 // loop_body
                %v645 = vld [vmem:[%s643] sm:%s636]
                %646 = vst [vmem:[%s644] sm:%s636] %v645
                %v647 = vld [vmem:[%s643 + $0x8] sm:%s636]
                %648 = vst [vmem:[%s644 + $0x4] sm:%s636] %v647
                %v649 = vld [vmem:[%s643 + $0x10] sm:%s636]
                %650 = vst [vmem:[%s644 + $0x8] sm:%s636] %v649
                %v651 = vld [vmem:[%s643 + $0x18] sm:%s636]
                %652 = vst [vmem:[%s644 + $0xc] sm:%s636] %v651
              $region130: #{tpu_custom_call.1} parent=124 // loop_footer
                %s642 = sadd.s32 1, %s638
              $region131: #{tpu_custom_call.1} parent=124 // loop_footer_branch
                %637 = sbr.rel target = $region127
              $region132: #{tpu_custom_call.1} parent=124 // loop_exit
                _
            $region125: #{tpu_custom_call.1} parent=116 // pred_fallthru
              _
          $region117: #{tpu_custom_call.1} parent=112 // pred_fallthru
            _
          %681 = vnop
        $region113: #{tpu_custom_call.1} parent=51 // pred_fallthru
          _
        // Predicated region
        $region151: #{tpu_custom_call.1} parent=51 // pred_check
          %p682 = pneg %p398
        $region152: #{tpu_custom_call.1} parent=51 // pred_check_branch
          %684 = sbr.rel (%p682) target = $region154
        $region153: #{tpu_custom_call.1} parent=51 // pred_region
          %s685 = smul.u32 16, %s38
          %p686 = scmp.lt.s32.totalorder %s685, 31
          %s687 = scalar_select %p686, %s685, 31
          %s688 = smul.addr %s687, 4
          %s689 = scalar_lea.vmem %s14, %s688
          %s690 = smul.u32 16, %s38
        $region154: #{tpu_custom_call.1} parent=51 // pred_fallthru
          _
      $region52: #{tpu_custom_call.1} parent=5 // pred_fallthru
        _
      %p691 = scmp.le.s32.totalorder 1, %s29
      %p692 = scmp.lt.s32.totalorder %s29, 9
      %p693 = pnand %p691, %p692
      %p694 = pneg %p693
      // Predicated region
      $region155: #{tpu_custom_call.1} parent=5 // pred_check
        _
      $region156: #{tpu_custom_call.1} parent=5 // pred_check_branch
        %696 = sbr.rel (%p693) target = $region158
      $region157: #{tpu_custom_call.1} parent=5 // pred_region
        %s697 = ssub.s32 %s29, 1
        // Predicated region
        $region159: #{tpu_custom_call.1} parent=157 // pred_check
          %p698 = pneg %p284
        $region160: #{tpu_custom_call.1} parent=157 // pred_check_branch
          %700 = sbr.rel (%p698) target = $region162
        $region161: #{tpu_custom_call.1} parent=157 // pred_region
          %702 = dma.done [#allocation11], 16
        $region162: #{tpu_custom_call.1} parent=157 // pred_fallthru
          _
        // Predicated region
        $region163: #{tpu_custom_call.1} parent=157 // pred_check
          %p703 = pneg %p326
        $region164: #{tpu_custom_call.1} parent=157 // pred_check_branch
          %705 = sbr.rel (%p703) target = $region166
        $region165: #{tpu_custom_call.1} parent=157 // pred_region
          %707 = dma.done [#allocation14], 16
        $region166: #{tpu_custom_call.1} parent=157 // pred_fallthru
          _
        %s708 = sand.u32 %s339, 1
        %s709 = sand.u32 %s339, 1
        %s710 = smul.addr %s709, 16
        %s711 = scalar_lea.vmem [#allocation15], %s710
        // Predicated region
        $region167: #{tpu_custom_call.1} parent=157 // pred_check
          %p712 = pneg %p352
        $region168: #{tpu_custom_call.1} parent=157 // pred_check_branch
          %714 = sbr.rel (%p712) target = $region170
        $region169: #{tpu_custom_call.1} parent=157 // pred_region
          _
        $region170: #{tpu_custom_call.1} parent=157 // pred_fallthru
          _
        %s715 = sand.u32 %s365, 1
        %s716 = sand.u32 %s365, 1
        %s717 = smul.addr %s716, 16
        %s718 = scalar_lea.vmem [#allocation16], %s717
        // Predicated region
        $region171: #{tpu_custom_call.1} parent=157 // pred_check
          %p719 = pneg %p378
        $region172: #{tpu_custom_call.1} parent=157 // pred_check_branch
          %721 = sbr.rel (%p719) target = $region174
        $region173: #{tpu_custom_call.1} parent=157 // pred_region
          _
        $region174: #{tpu_custom_call.1} parent=157 // pred_fallthru
          _
        %p722 = scmp.lt.s32.totalorder %s39, 1
        %s723 = scalar_select %p722, %s39, 1
        %p724 = scmp.lt.s32.totalorder %s40, 1
        %s725 = scalar_select %p724, %s40, 1
        %s726 = smul.addr %s723, 2
        %s727 = sadd.s32 %s725, %s726
        %s728 = smul.addr %s727, 8
        %s729 = scalar_lea.vmem %s0, %s728
        %p730 = pneg %p76
        %p731 = pneg %p73
        %p732 = scmp.lt.s32.totalorder %s39, 1
        %s733 = scalar_select %p732, %s39, 1
        %s734 = smul.addr %s733, 2
        %s735 = smul.addr %s734, 4
        %s736 = scalar_lea.vmem %s1, %s735
        %p737 = pneg %p102
        %p738 = pneg %p99
        %p739 = scmp.lt.s32.totalorder %s39, 1
        %s740 = scalar_select %p739, %s39, 1
        %p741 = scmp.lt.s32.totalorder %s40, 1
        %s742 = scalar_select %p741, %s40, 1
        %s743 = smul.addr %s740, 2
        %s744 = sadd.s32 %s742, %s743
        %s745 = smul.addr %s744, 4
        %s746 = scalar_lea.vmem %s2, %s745
        %p747 = pneg %p130
        %p748 = pneg %p127
        %p749 = scmp.lt.s32.totalorder %s39, 1
        %s750 = scalar_select %p749, %s39, 1
        %p751 = scmp.lt.s32.totalorder %s40, 1
        %s752 = scalar_select %p751, %s40, 1
        %s753 = smul.addr %s750, 2
        %s754 = sadd.s32 %s752, %s753
        %s755 = smul.addr %s754, 8
        %s756 = scalar_lea.vmem %s3, %s755
        %p757 = pneg %p158
        %p758 = pneg %p155
        %p759 = pneg %p179
        %p760 = pneg %p176
        %p761 = pneg %p200
        %p762 = pneg %p197
        %p763 = pneg %p221
        %p764 = pneg %p218
        %p765 = pneg %p242
        %p766 = pneg %p239
        %p767 = pneg %p263
        %p768 = pneg %p260
        %p769 = pneg %p284
        %p770 = pneg %p281
        %p771 = pneg %p305
        %p772 = pneg %p302
        %p773 = pneg %p326
        %p774 = pneg %p323
        %s775 = sand.u32 %s339, 1
        %s776 = sand.u32 %s339, 1
        %s777 = smul.addr %s776, 16
        %s778 = scalar_lea.vmem [#allocation15], %s777
        %p779 = pneg %p352
        %p780 = pneg %p349
        %s781 = sand.u32 %s365, 1
        %s782 = sand.u32 %s365, 1
        %s783 = smul.addr %s782, 16
        %s784 = scalar_lea.vmem [#allocation16], %s783
        %p785 = pneg %p378
        %p786 = pneg %p375
        %s787 = smul.u32 16, %s41
        %p788 = scmp.lt.s32.totalorder %s787, 31
        %s789 = scalar_select %p788, %s787, 31
        %s790 = smul.addr %s789, 4
        %s791 = scalar_lea.vmem %s14, %s790
        %p792 = pneg %p404
        %p793 = pneg %p401
        %p794 = pneg %p425
        %p795 = pneg %p422
        %p796 = pneg %p453
        %p797 = pneg %p450
        %s798 = sand.u32 %s440, 1
        %s799 = scalar_lea.sflag [#allocation12], %s798
        %s800 = sand.u32 %s440, 1
        %s801 = smul.addr %s800, 8
        %s802 = scalar_lea.vmem [#allocation17], %s801
        %p803 = scmp.lt.s32.totalorder %s39, 1
        %s804 = scalar_select %p803, %s39, 1
        %p805 = scmp.lt.s32.totalorder %s40, 1
        %s806 = scalar_select %p805, %s40, 1
        %s807 = smul.addr %s804, 2
        %s808 = sadd.s32 %s806, %s807
        %s809 = smul.addr %s808, 8
        %s810 = scalar_lea.vmem %s0, %s809
        %p811 = scmp.lt.s32.totalorder %s39, 1
        %s812 = scalar_select %p811, %s39, 1
        %s813 = smul.addr %s812, 2
        %s814 = smul.addr %s813, 4
        %s815 = scalar_lea.vmem %s1, %s814
        %p816 = scmp.lt.s32.totalorder %s39, 1
        %s817 = scalar_select %p816, %s39, 1
        %p818 = scmp.lt.s32.totalorder %s40, 1
        %s819 = scalar_select %p818, %s40, 1
        %s820 = smul.addr %s817, 2
        %s821 = sadd.s32 %s819, %s820
        %s822 = smul.addr %s821, 4
        %s823 = scalar_lea.vmem %s2, %s822
        %p824 = scmp.lt.s32.totalorder %s39, 1
        %s825 = scalar_select %p824, %s39, 1
        %p826 = scmp.lt.s32.totalorder %s40, 1
        %s827 = scalar_select %p826, %s40, 1
        %s828 = smul.addr %s825, 2
        %s829 = sadd.s32 %s827, %s828
        %s830 = smul.addr %s829, 8
        %s831 = scalar_lea.vmem %s3, %s830
        %s832 = smul.u32 16, %s41
        %p833 = scmp.lt.s32.totalorder %s832, 31
        %s834 = scalar_select %p833, %s832, 31
        %s835 = smul.addr %s834, 4
        %s836 = scalar_lea.vmem %s14, %s835
        %s837 = smul.u32 16, %s41
        %p839 = scmp.eq.s32.totalorder %s40, 0
        %p840 = scmp.eq.s32.totalorder %s41, 0
        %p841 = pnand %p839, %p840
        %p842 = pneg %p841
        // Predicated region
        $region175: #{tpu_custom_call.1} parent=157 // pred_check
          _
        $region176: #{tpu_custom_call.1} parent=157 // pred_check_branch
          %844 = sbr.rel (%p841) target = $region178
        $region177: #{tpu_custom_call.1} parent=157 // pred_region
          %v845 = vld [vmem:[%s815] sm:$0xf]
          %v846 = vld [vmem:[%s815 + $0x4] sm:$0xf]
          %v847 = vld [vmem:[%s6] sm:$0xf]
          %v848 = vld [vmem:[%s6 + $0x4] sm:$0xf]
          %v849 = vld [vmem:[%s6 + $0x8] sm:$0xf]
          %v850 = vld [vmem:[%s6 + $0xc] sm:$0xf]
          %v853 = vunpack.c.l.b16 %v845
          %v854 = vunpack.c.l.b16 %v846
          %v855 = vpack.c.b16 %v854, %v853
          %v860 = vunpack.c.l.b16 %v847
          %v861 = vunpack.c.l.b16 %v848
          %v862 = vunpack.c.l.b16 %v849
          %v863 = vunpack.c.l.b16 %v850
          %v864 = vpack.c.b16 %v861, %v860
          %v865 = vpack.c.b16 %v863, %v862
          %vm868 = vcmask 261120
          %v870 = vsel %vm868, %v855, 0
          %872 = vmatpush.bf16.msra.mxu0 0
          %873 = vmatpush.bf16.msra.mxu0 0
          %874 = vmatpush.bf16.msra.mxu0 0
          %875 = vmatpush.bf16.msra.mxu0 0
          %876 = vmatpush.bf16.msra.mxu0 0
          %877 = vmatpush.bf16.msra.mxu0 0
          %878 = vmatpush.bf16.msra.mxu0 %v865
          %879 = vmatpush.bf16.msra.mxu0 %v864
          %880 = vmatmul.bf16.gmra.mxu0 %v870
          %v881 = vpop.f32.mrf.mxu0
          %v882 = vadd.f32 0.0, %v881
          %v883 = vpop.f32.mrf.mxu0
          %v884 = vadd.f32 0.0, %v883
          %885 = vdwg.mxu0
          %v886 = vld [vmem:[#allocation10] sm:$0x1]
          %v887 = vmul.f32 %v882, %v882
          %v888 = vmul.f32 %v884, %v884
          %vm889 = vcmask 64512
          %v890 = vsel %vm889, %v887, 0.0
          %891 = vadd.xlane.f32.xlu0 %v890
          %v892 = vpop.xlane.xlu0 %891
          %v893 = vsel %vm889, %v888, 0.0
          %894 = vadd.xlane.f32.xlu0 %v893
          %v895 = vpop.xlane.xlu0 %894
          %v896 = vrcp.pop 8.0
          %v897 = vmul.f32 8.0, %v896
          %v898 = vsub.f32 1.0, %v897
          %v899 = vmul.f32 %v896, %v898
          %v900 = vadd.f32 %v896, %v899
          %vm901 = vweird.f32 %v896
          %v902 = vsel %vm901, %v896, %v900
          %v903 = vmul.f32 %v892, %v902
          %v904 = vmul.f32 %v895, %v902
          %v905 = vadd.f32 %v903, 1e-05
          %v906 = vadd.f32 %v904, 1e-05
          %v907 = vrsqrt.pop %v905
          %v908 = vmul.f32 %v907, %v905
          %v909 = vmul.f32 %v908, %v907
          %v910 = vmul.f32 0.5, %v909
          %v911 = vsub.f32 1.5, %v910
          %v912 = vmul.f32 %v907, %v911
          %vm913 = vweird.f32 %v905
          %vm914 = vweird.f32 %v907
          %vm915 = vmor %vm913, %vm914
          %v916 = vsel %vm915, %v907, %v912
          %v917 = vrsqrt.pop %v906
          %v918 = vmul.f32 %v917, %v906
          %v919 = vmul.f32 %v918, %v917
          %v920 = vmul.f32 0.5, %v919
          %v921 = vsub.f32 1.5, %v920
          %v922 = vmul.f32 %v917, %v921
          %vm923 = vweird.f32 %v906
          %vm924 = vweird.f32 %v917
          %vm925 = vmor %vm923, %vm924
          %v926 = vsel %vm925, %v917, %v922
          %v927 = vmul.f32 %v882, %v916
          %v928 = vmul.f32 %v884, %v926
          %v930 = vperm.slane %v886, 0
          %v932 = vmul.f32 %v927, %v930
          %v933 = vmul.f32 %v928, %v930
          %v934 = vpack.c.bf16 %v932, %v932
          %v935 = vpack.c.bf16 %v933, %v933
          %vm936 = vcmask 60416
          %937 = vst.msk [vmem:[#allocation2] sm:$0xf] %vm936, %v934
          %938 = vst.msk [vmem:[#allocation2 + $0x4] sm:$0xf] %vm936, %v935
          %941 = vrot.lane.b32.xlu0 %v887, 120
          %v942 = vpop.permute.xlu0 %941
          %943 = vrot.lane.b32.xlu0 %v888, 120
          %v944 = vpop.permute.xlu0 %943
          %v947 = vsel %vm889, %v942, 0.0
          %948 = vadd.xlane.f32.xlu0 %v947
          %v949 = vpop.xlane.xlu0 %948
          %v950 = vsel %vm889, %v944, 0.0
          %951 = vadd.xlane.f32.xlu0 %v950
          %v952 = vpop.xlane.xlu0 %951
          %v953 = vmul.f32 %v949, %v902
          %v954 = vmul.f32 %v952, %v902
          %v955 = vadd.f32 %v953, 1e-05
          %v956 = vadd.f32 %v954, 1e-05
          %v957 = vrsqrt.pop %v955
          %v958 = vmul.f32 %v957, %v955
          %v959 = vmul.f32 %v958, %v957
          %v960 = vmul.f32 0.5, %v959
          %v961 = vsub.f32 1.5, %v960
          %v962 = vmul.f32 %v957, %v961
          %vm963 = vweird.f32 %v955
          %vm964 = vweird.f32 %v957
          %vm965 = vmor %vm963, %vm964
          %v966 = vsel %vm965, %v957, %v962
          %v967 = vrsqrt.pop %v956
          %v968 = vmul.f32 %v967, %v956
          %v969 = vmul.f32 %v968, %v967
          %v970 = vmul.f32 0.5, %v969
          %v971 = vsub.f32 1.5, %v970
          %v972 = vmul.f32 %v967, %v971
          %vm973 = vweird.f32 %v956
          %vm974 = vweird.f32 %v967
          %vm975 = vmor %vm973, %vm974
          %v976 = vsel %vm975, %v967, %v972
          %v977 = vmul.f32 %v882, %v966
          %v978 = vmul.f32 %v884, %v976
          %979 = vrot.lane.b32.xlu0 %v930, 8
          %v980 = vpop.permute.xlu0 %979
          %v982 = vmul.f32 %v977, %v980
          %v983 = vmul.f32 %v978, %v980
          %v984 = vpack.c.bf16 %v982, %v982
          %v985 = vpack.c.bf16 %v983, %v983
          %vm986 = vcmask 126016
          %987 = vst.msk [vmem:[#allocation2] sm:$0xf] %vm986, %v984
          %988 = vst.msk [vmem:[#allocation2 + $0x4] sm:$0xf] %vm986, %v985
          %v989 = vpack.c.bf16 %v882, %v882
          %v990 = vpack.c.bf16 %v884, %v884
          %993 = vrot.lane.b32.xlu0 %v989, 112
          %v994 = vpop.permute.xlu0 %993
          %995 = vrot.lane.b32.xlu0 %v990, 112
          %v996 = vpop.permute.xlu0 %995
          %vm999 = vcmask 125952
          %1000 = vst.msk [vmem:[#allocation3] sm:$0xf] %vm999, %v994
          %1001 = vst.msk [vmem:[#allocation3 + $0x4] sm:$0xf] %vm999, %v996
        $region178: #{tpu_custom_call.1} parent=157 // pred_fallthru
          _
        // Predicated region
        $region179: #{tpu_custom_call.1} parent=157 // pred_check
          %p1002 = pneg %p840
        $region180: #{tpu_custom_call.1} parent=157 // pred_check_branch
          %1004 = sbr.rel (%p1002) target = $region182
        $region181: #{tpu_custom_call.1} parent=157 // pred_region
          %v1005 = vld [vmem:[%s810] sm:$0xff]
          %v1006 = vld [vmem:[%s4] sm:$0x1]
          %v1007 = vmul.f32 %v1005, %v1005
          %vm1008 = vcmask 261120
          %v1009 = vsel %vm1008, %v1007, 0.0
          %1010 = vadd.xlane.f32.xlu0 %v1009
          %v1011 = vpop.xlane.xlu0 %1010
          %v1012 = vrcp.pop 32.0
          %v1013 = vmul.f32 32.0, %v1012
          %v1014 = vsub.f32 1.0, %v1013
          %v1015 = vmul.f32 %v1012, %v1014
          %v1016 = vadd.f32 %v1012, %v1015
          %vm1017 = vweird.f32 %v1012
          %v1018 = vsel %vm1017, %v1012, %v1016
          %v1019 = vmul.f32 %v1011, %v1018
          %v1020 = vadd.f32 %v1019, 1e-05
          %v1021 = vrsqrt.pop %v1020
          %v1022 = vmul.f32 %v1021, %v1020
          %v1023 = vmul.f32 %v1022, %v1021
          %v1024 = vmul.f32 0.5, %v1023
          %v1025 = vsub.f32 1.5, %v1024
          %v1026 = vmul.f32 %v1021, %v1025
          %vm1027 = vweird.f32 %v1020
          %vm1028 = vweird.f32 %v1021
          %vm1029 = vmor %vm1027, %vm1028
          %v1030 = vsel %vm1029, %v1021, %v1026
          %v1031 = vmul.f32 %v1005, %v1030
          %v1033 = vperm.slane %v1006, 0
          %v1035 = vmul.f32 %v1031, %v1033
          %v1036 = vpack.c.bf16 %v1035, %v1035
          %v1037 = vld [vmem:[%s5] sm:$0xf]
          %v1038 = vld [vmem:[%s5 + $0x4] sm:$0xf]
          %v1039 = vld [vmem:[%s5 + $0x8] sm:$0xf]
          %v1040 = vld [vmem:[%s5 + $0xc] sm:$0xf]
          %v1045 = vunpack.c.l.b16 %v1037
          %v1046 = vunpack.c.l.b16 %v1038
          %v1047 = vunpack.c.l.b16 %v1039
          %v1048 = vunpack.c.l.b16 %v1040
          %v1049 = vpack.c.b16 %v1046, %v1045
          %v1050 = vpack.c.b16 %v1048, %v1047
          %v1054 = vsel %vm1008, %v1036, 0
          %1056 = vmatpush.bf16.msra.mxu0 0
          %1057 = vmatpush.bf16.msra.mxu0 0
          %1058 = vmatpush.bf16.msra.mxu0 0
          %1059 = vmatpush.bf16.msra.mxu0 0
          %1060 = vmatpush.bf16.msra.mxu0 0
          %1061 = vmatpush.bf16.msra.mxu0 0
          %1062 = vmatpush.bf16.msra.mxu0 %v1050
          %1063 = vmatpush.bf16.msra.mxu0 %v1049
          %1064 = vmatmul.bf16.gmra.mxu0 %v1054
          %v1065 = vpop.f32.mrf.mxu0
          %v1066 = vadd.f32 0.0, %v1065
          %v1067 = vpop.f32.mrf.mxu0
          %1068 = vdwg.mxu0
          %v1069 = vld [vmem:[%s823] sm:$0xf]
          %v1070 = vunpack.c.l.bf16 %v1069
          %v1071 = vld [vmem:[%s8] sm:$0x1]
          %v1072 = vmul.f32 %v1071, 0.35355338
          %v1073 = vld [vmem:[#allocation2] sm:$0xf]
          %v1074 = vld [vmem:[#allocation2 + $0x4] sm:$0xf]
          %v1075 = vld [vmem:[#allocation3] sm:$0xf]
          %v1076 = vld [vmem:[#allocation3 + $0x4] sm:$0xf]
          %v1077 = vmul.f32 %v1066, %v1066
          %vm1078 = vcmask 64512
          %v1079 = vsel %vm1078, %v1077, 0.0
          %1080 = vadd.xlane.f32.xlu0 %v1079
          %v1081 = vpop.xlane.xlu0 %1080
          %v1082 = vrcp.pop 8.0
          %v1083 = vmul.f32 8.0, %v1082
          %v1084 = vsub.f32 1.0, %v1083
          %v1085 = vmul.f32 %v1082, %v1084
          %v1086 = vadd.f32 %v1082, %v1085
          %vm1087 = vweird.f32 %v1082
          %v1088 = vsel %vm1087, %v1082, %v1086
          %v1089 = vmul.f32 %v1081, %v1088
          %v1090 = vadd.f32 %v1089, 1e-05
          %v1091 = vrsqrt.pop %v1090
          %v1092 = vmul.f32 %v1091, %v1090
          %v1093 = vmul.f32 %v1092, %v1091
          %v1094 = vmul.f32 0.5, %v1093
          %v1095 = vsub.f32 1.5, %v1094
          %v1096 = vmul.f32 %v1091, %v1095
          %vm1097 = vweird.f32 %v1090
          %vm1098 = vweird.f32 %v1091
          %vm1099 = vmor %vm1097, %vm1098
          %v1100 = vsel %vm1099, %v1091, %v1096
          %v1101 = vmul.f32 %v1066, %v1100
          %v1103 = vperm.slane %v1072, 0
          %v1105 = vmul.f32 %v1101, %v1103
          %v1106 = vpack.c.bf16 %v1105, %v1105
          %v1109 = vunpack.c.l.b16 %v1073
          %v1110 = vunpack.c.l.b16 %v1074
          %v1111 = vpack.c.b16 %v1110, %v1109
          %v1113 = vsel %vm1078, %v1106, 0
          %v1116 = vsel %vm1078, %v1111, 0
          %1118 = vmatpush.bf16.xpose.msra.mxu0 0
          %1119 = vmatpush.bf16.xpose.msra.mxu0 0
          %1120 = vmatpush.bf16.xpose.msra.mxu0 0
          %1121 = vmatpush.bf16.xpose.msra.mxu0 0
          %1122 = vmatpush.bf16.xpose.msra.mxu0 0
          %1123 = vmatpush.bf16.xpose.msra.mxu0 0
          %1124 = vmatpush.bf16.xpose.msra.mxu0 0
          %1125 = vmatpush.bf16.xpose.msra.mxu0 %v1116
          %1126 = vmatmul.bf16.gmra.mxu0 %v1113
          %v1127 = vpop.f32.mrf.mxu0
          %v1128 = vadd.f32 %v1070, %v1127
          %v1129 = vpop.f32.mrf.mxu0
          %1130 = vdwg.mxu0
          %vm1131 = vcmask 130048
          %v1132 = vsel %vm1131, %v1128, -inf
          %1133 = vmax.xlane.f32.xlu0 %v1132
          %v1134 = vpop.xlane.xlu0 %1133
          %v1135 = vsub.f32 %v1128, %v1134
          %v1136 = vpack.c.bf16 %v1135, %v1135
          %v1137 = vunpack.c.l.bf16 %v1136
          %v1138 = vmul.f32 %v1137, 1.442695
          %v1139 = vpow.pop %v1138
          %v1140 = vpack.c.bf16 %v1139, %v1139
          %v1141 = vunpack.c.l.bf16 %v1140
          %v1142 = vsel %vm1131, %v1141, 0.0
          %1143 = vadd.xlane.f32.xlu0 %v1142
          %v1144 = vpop.xlane.xlu0 %1143
          %v1145 = vrcp.pop %v1144
          %v1148 = vunpack.c.l.b16 %v1075
          %v1149 = vunpack.c.l.b16 %v1076
          %v1150 = vpack.c.b16 %v1149, %v1148
          %v1153 = vsel %vm1131, %v1140, 0
          %1155 = vmatpush.bf16.msra.mxu0 0
          %1156 = vmatpush.bf16.msra.mxu0 0
          %1157 = vmatpush.bf16.msra.mxu0 0
          %1158 = vmatpush.bf16.msra.mxu0 0
          %1159 = vmatpush.bf16.msra.mxu0 0
          %1160 = vmatpush.bf16.msra.mxu0 0
          %1161 = vmatpush.bf16.msra.mxu0 0
          %1162 = vmatpush.bf16.msra.mxu0 %v1150
          %1163 = vmatmul.bf16.gmra.mxu0 %v1153
          %v1164 = vpop.f32.mrf.mxu0
          %v1165 = vadd.f32 0.0, %v1164
          %v1166 = vpop.f32.mrf.mxu0
          %1167 = vdwg.mxu0
          %v1168 = vmul.f32 %v1165, %v1145
          %v1169 = vpack.c.bf16 %v1168, %v1168
          %vm1170 = vcmask 60416
          %1171 = vst.msk [vmem:[#allocation4] sm:$0xf] %vm1170, %v1169
          %1173 = vrot.lane.b32.xlu0 %v1077, 120
          %v1174 = vpop.permute.xlu0 %1173
          %v1176 = vsel %vm1078, %v1174, 0.0
          %1177 = vadd.xlane.f32.xlu0 %v1176
          %v1178 = vpop.xlane.xlu0 %1177
          %v1179 = vmul.f32 %v1178, %v1088
          %v1180 = vadd.f32 %v1179, 1e-05
          %v1181 = vrsqrt.pop %v1180
          %v1182 = vmul.f32 %v1181, %v1180
          %v1183 = vmul.f32 %v1182, %v1181
          %v1184 = vmul.f32 0.5, %v1183
          %v1185 = vsub.f32 1.5, %v1184
          %v1186 = vmul.f32 %v1181, %v1185
          %vm1187 = vweird.f32 %v1180
          %vm1188 = vweird.f32 %v1181
          %vm1189 = vmor %vm1187, %vm1188
          %v1190 = vsel %vm1189, %v1181, %v1186
          %v1191 = vmul.f32 %v1066, %v1190
          %1192 = vrot.lane.b32.xlu0 %v1103, 8
          %v1193 = vpop.permute.xlu0 %1192
          %v1195 = vmul.f32 %v1191, %v1193
          %v1196 = vpack.c.bf16 %v1195, %v1195
          %1198 = vrot.lane.b32.xlu0 %v1196, 120
          %v1199 = vpop.permute.xlu0 %1198
          %v1201 = vsel %vm1078, %v1199, 0
          %1203 = vmatpush.bf16.xpose.msra.mxu0 0
          %1204 = vmatpush.bf16.xpose.msra.mxu0 0
          %1205 = vmatpush.bf16.xpose.msra.mxu0 0
          %1206 = vmatpush.bf16.xpose.msra.mxu0 0
          %1207 = vmatpush.bf16.xpose.msra.mxu0 0
          %1208 = vmatpush.bf16.xpose.msra.mxu0 0
          %1209 = vmatpush.bf16.xpose.msra.mxu0 0
          %1210 = vmatpush.bf16.xpose.msra.mxu0 %v1116
          %1211 = vmatmul.bf16.gmra.mxu0 %v1201
          %v1212 = vpop.f32.mrf.mxu0
          %v1213 = vadd.f32 %v1070, %v1212
          %v1214 = vpop.f32.mrf.mxu0
          %1215 = vdwg.mxu0
          %v1216 = vsel %vm1131, %v1213, -inf
          %1217 = vmax.xlane.f32.xlu0 %v1216
          %v1218 = vpop.xlane.xlu0 %1217
          %v1219 = vsub.f32 %v1213, %v1218
          %v1220 = vpack.c.bf16 %v1219, %v1219
          %v1221 = vunpack.c.l.bf16 %v1220
          %v1222 = vmul.f32 %v1221, 1.442695
          %v1223 = vpow.pop %v1222
          %v1224 = vpack.c.bf16 %v1223, %v1223
          %v1225 = vunpack.c.l.bf16 %v1224
          %v1226 = vsel %vm1131, %v1225, 0.0
          %1227 = vadd.xlane.f32.xlu0 %v1226
          %v1228 = vpop.xlane.xlu0 %1227
          %v1229 = vrcp.pop %v1228
          %v1231 = vsel %vm1131, %v1224, 0
          %1233 = vmatpush.bf16.msra.mxu0 0
          %1234 = vmatpush.bf16.msra.mxu0 0
          %1235 = vmatpush.bf16.msra.mxu0 0
          %1236 = vmatpush.bf16.msra.mxu0 0
          %1237 = vmatpush.bf16.msra.mxu0 0
          %1238 = vmatpush.bf16.msra.mxu0 0
          %1239 = vmatpush.bf16.msra.mxu0 0
          %1240 = vmatpush.bf16.msra.mxu0 %v1150
          %1241 = vmatmul.bf16.gmra.mxu0 %v1231
          %v1242 = vpop.f32.mrf.mxu0
          %v1243 = vadd.f32 0.0, %v1242
          %v1244 = vpop.f32.mrf.mxu0
          %1245 = vdwg.mxu0
          %v1246 = vmul.f32 %v1243, %v1229
          %v1247 = vpack.c.bf16 %v1246, %v1246
          %1249 = vrot.lane.b32.xlu0 %v1247, 8
          %v1250 = vpop.permute.xlu0 %1249
          %vm1252 = vcmask 126016
          %1253 = vst.msk [vmem:[#allocation4] sm:$0xf] %vm1252, %v1250
          %v1254 = vld [vmem:[#allocation2] sm:$0xf]
          %v1255 = vld [vmem:[#allocation2 + $0x4] sm:$0xf]
          %v1256 = vld [vmem:[#allocation3] sm:$0xf]
          %v1257 = vld [vmem:[#allocation3 + $0x4] sm:$0xf]
          %1258 = vrot.lane.b32.xlu0 %v1077, 112
          %v1259 = vpop.permute.xlu0 %1258
          %v1261 = vsel %vm1078, %v1259, 0.0
          %1262 = vadd.xlane.f32.xlu0 %v1261
          %v1263 = vpop.xlane.xlu0 %1262
          %v1264 = vmul.f32 %v1263, %v1088
          %v1265 = vadd.f32 %v1264, 1e-05
          %v1266 = vrsqrt.pop %v1265
          %v1267 = vmul.f32 %v1266, %v1265
          %v1268 = vmul.f32 %v1267, %v1266
          %v1269 = vmul.f32 0.5, %v1268
          %v1270 = vsub.f32 1.5, %v1269
          %v1271 = vmul.f32 %v1266, %v1270
          %vm1272 = vweird.f32 %v1265
          %vm1273 = vweird.f32 %v1266
          %vm1274 = vmor %vm1272, %vm1273
          %v1275 = vsel %vm1274, %v1266, %v1271
          %v1276 = vmul.f32 %v1066, %v1275
          %1277 = vrot.lane.b32.xlu0 %v1103, 16
          %v1278 = vpop.permute.xlu0 %1277
          %v1280 = vmul.f32 %v1276, %v1278
          %v1281 = vpack.c.bf16 %v1280, %v1280
          %1283 = vrot.lane.b32.xlu0 %v1281, 112
          %v1284 = vpop.permute.xlu0 %1283
          %v1287 = vunpack.c.l.b16 %v1254
          %v1288 = vunpack.c.l.b16 %v1255
          %v1289 = vpack.c.b16 %v1288, %v1287
          %1290 = vrot.lane.b32.xlu0 %v1289, 120
          %v1291 = vpop.permute.xlu0 %1290
          %v1293 = vsel %vm1078, %v1284, 0
          %v1296 = vsel %vm1078, %v1291, 0
          %1298 = vmatpush.bf16.xpose.msra.mxu0 0
          %1299 = vmatpush.bf16.xpose.msra.mxu0 0
          %1300 = vmatpush.bf16.xpose.msra.mxu0 0
          %1301 = vmatpush.bf16.xpose.msra.mxu0 0
          %1302 = vmatpush.bf16.xpose.msra.mxu0 0
          %1303 = vmatpush.bf16.xpose.msra.mxu0 0
          %1304 = vmatpush.bf16.xpose.msra.mxu0 0
          %1305 = vmatpush.bf16.xpose.msra.mxu0 %v1296
          %1306 = vmatmul.bf16.gmra.mxu0 %v1293
          %v1307 = vpop.f32.mrf.mxu0
          %v1308 = vadd.f32 %v1070, %v1307
          %v1309 = vpop.f32.mrf.mxu0
          %1310 = vdwg.mxu0
          %v1311 = vsel %vm1131, %v1308, -inf
          %1312 = vmax.xlane.f32.xlu0 %v1311
          %v1313 = vpop.xlane.xlu0 %1312
          %v1314 = vsub.f32 %v1308, %v1313
          %v1315 = vpack.c.bf16 %v1314, %v1314
          %v1316 = vunpack.c.l.bf16 %v1315
          %v1317 = vmul.f32 %v1316, 1.442695
          %v1318 = vpow.pop %v1317
          %v1319 = vpack.c.bf16 %v1318, %v1318
          %v1320 = vunpack.c.l.bf16 %v1319
          %v1321 = vsel %vm1131, %v1320, 0.0
          %1322 = vadd.xlane.f32.xlu0 %v1321
          %v1323 = vpop.xlane.xlu0 %1322
          %v1324 = vrcp.pop %v1323
          %v1327 = vunpack.c.l.b16 %v1256
          %v1328 = vunpack.c.l.b16 %v1257
          %v1329 = vpack.c.b16 %v1328, %v1327
          %1330 = vrot.lane.b32.xlu0 %v1329, 120
          %v1331 = vpop.permute.xlu0 %1330
          %v1334 = vsel %vm1131, %v1319, 0
          %1336 = vmatpush.bf16.msra.mxu0 0
          %1337 = vmatpush.bf16.msra.mxu0 0
          %1338 = vmatpush.bf16.msra.mxu0 0
          %1339 = vmatpush.bf16.msra.mxu0 0
          %1340 = vmatpush.bf16.msra.mxu0 0
          %1341 = vmatpush.bf16.msra.mxu0 0
          %1342 = vmatpush.bf16.msra.mxu0 0
          %1343 = vmatpush.bf16.msra.mxu0 %v1331
          %1344 = vmatmul.bf16.gmra.mxu0 %v1334
          %v1345 = vpop.f32.mrf.mxu0
          %v1346 = vadd.f32 0.0, %v1345
          %v1347 = vpop.f32.mrf.mxu0
          %1348 = vdwg.mxu0
          %v1349 = vmul.f32 %v1346, %v1324
          %v1350 = vpack.c.bf16 %v1349, %v1349
          %1352 = vrot.lane.b32.xlu0 %v1350, 16
          %v1353 = vpop.permute.xlu0 %1352
          %vm1355 = vcmask 191616
          %1356 = vst.msk [vmem:[#allocation4] sm:$0xf] %vm1355, %v1353
          %1357 = vrot.lane.b32.xlu0 %v1077, 104
          %v1358 = vpop.permute.xlu0 %1357
          %v1360 = vsel %vm1078, %v1358, 0.0
          %1361 = vadd.xlane.f32.xlu0 %v1360
          %v1362 = vpop.xlane.xlu0 %1361
          %v1363 = vmul.f32 %v1362, %v1088
          %v1364 = vadd.f32 %v1363, 1e-05
          %v1365 = vrsqrt.pop %v1364
          %v1366 = vmul.f32 %v1365, %v1364
          %v1367 = vmul.f32 %v1366, %v1365
          %v1368 = vmul.f32 0.5, %v1367
          %v1369 = vsub.f32 1.5, %v1368
          %v1370 = vmul.f32 %v1365, %v1369
          %vm1371 = vweird.f32 %v1364
          %vm1372 = vweird.f32 %v1365
          %vm1373 = vmor %vm1371, %vm1372
          %v1374 = vsel %vm1373, %v1365, %v1370
          %v1375 = vmul.f32 %v1066, %v1374
          %1376 = vrot.lane.b32.xlu0 %v1103, 24
          %v1377 = vpop.permute.xlu0 %1376
          %v1379 = vmul.f32 %v1375, %v1377
          %v1380 = vpack.c.bf16 %v1379, %v1379
          %1382 = vrot.lane.b32.xlu0 %v1380, 104
          %v1383 = vpop.permute.xlu0 %1382
          %v1385 = vsel %vm1078, %v1383, 0
          %1387 = vmatpush.bf16.xpose.msra.mxu0 0
          %1388 = vmatpush.bf16.xpose.msra.mxu0 0
          %1389 = vmatpush.bf16.xpose.msra.mxu0 0
          %1390 = vmatpush.bf16.xpose.msra.mxu0 0
          %1391 = vmatpush.bf16.xpose.msra.mxu0 0
          %1392 = vmatpush.bf16.xpose.msra.mxu0 0
          %1393 = vmatpush.bf16.xpose.msra.mxu0 0
          %1394 = vmatpush.bf16.xpose.msra.mxu0 %v1296
          %1395 = vmatmul.bf16.gmra.mxu0 %v1385
          %v1396 = vpop.f32.mrf.mxu0
          %v1397 = vadd.f32 %v1070, %v1396
          %v1398 = vpop.f32.mrf.mxu0
          %1399 = vdwg.mxu0
          %v1400 = vsel %vm1131, %v1397, -inf
          %1401 = vmax.xlane.f32.xlu0 %v1400
          %v1402 = vpop.xlane.xlu0 %1401
          %v1403 = vsub.f32 %v1397, %v1402
          %v1404 = vpack.c.bf16 %v1403, %v1403
          %v1405 = vunpack.c.l.bf16 %v1404
          %v1406 = vmul.f32 %v1405, 1.442695
          %v1407 = vpow.pop %v1406
          %v1408 = vpack.c.bf16 %v1407, %v1407
          %v1409 = vunpack.c.l.bf16 %v1408
          %v1410 = vsel %vm1131, %v1409, 0.0
          %1411 = vadd.xlane.f32.xlu0 %v1410
          %v1412 = vpop.xlane.xlu0 %1411
          %v1413 = vrcp.pop %v1412
          %v1415 = vsel %vm1131, %v1408, 0
          %1417 = vmatpush.bf16.msra.mxu0 0
          %1418 = vmatpush.bf16.msra.mxu0 0
          %1419 = vmatpush.bf16.msra.mxu0 0
          %1420 = vmatpush.bf16.msra.mxu0 0
          %1421 = vmatpush.bf16.msra.mxu0 0
          %1422 = vmatpush.bf16.msra.mxu0 0
          %1423 = vmatpush.bf16.msra.mxu0 0
          %1424 = vmatpush.bf16.msra.mxu0 %v1331
          %1425 = vmatmul.bf16.gmra.mxu0 %v1415
          %v1426 = vpop.f32.mrf.mxu0
          %v1427 = vadd.f32 0.0, %v1426
          %v1428 = vpop.f32.mrf.mxu0
          %1429 = vdwg.mxu0
          %v1430 = vmul.f32 %v1427, %v1413
          %v1431 = vpack.c.bf16 %v1430, %v1430
          %1433 = vrot.lane.b32.xlu0 %v1431, 24
          %v1434 = vpop.permute.xlu0 %1433
          %vm1436 = vcmask 257216
          %1437 = vst.msk [vmem:[#allocation4] sm:$0xf] %vm1436, %v1434
          %v1438 = vld [vmem:[#allocation4] sm:$0xf]
          %v1439 = vld [vmem:[%s7] sm:$0xf]
          %v1440 = vld [vmem:[%s7 + $0x4] sm:$0xf]
          %v1441 = vld [vmem:[%s7 + $0x8] sm:$0xf]
          %v1442 = vld [vmem:[%s7 + $0xc] sm:$0xf]
          %v1447 = vunpack.c.l.b16 %v1439
          %v1448 = vunpack.c.l.b16 %v1440
          %v1449 = vunpack.c.l.b16 %v1441
          %v1450 = vunpack.c.l.b16 %v1442
          %v1451 = vpack.c.b16 %v1448, %v1447
          %v1452 = vpack.c.b16 %v1450, %v1449
          %v1456 = vsel %vm1008, %v1438, 0
          %1458 = vmatpush.bf16.msra.mxu0 0
          %1459 = vmatpush.bf16.msra.mxu0 0
          %1460 = vmatpush.bf16.msra.mxu0 0
          %1461 = vmatpush.bf16.msra.mxu0 0
          %1462 = vmatpush.bf16.msra.mxu0 0
          %1463 = vmatpush.bf16.msra.mxu0 0
          %1464 = vmatpush.bf16.msra.mxu0 %v1452
          %1465 = vmatpush.bf16.msra.mxu0 %v1451
          %1466 = vmatmul.bf16.gmra.mxu0 %v1456
          %v1467 = vpop.f32.mrf.mxu0
          %v1468 = vadd.f32 0.0, %v1467
          %v1469 = vpop.f32.mrf.mxu0
          %1470 = vdwg.mxu0
          %s1471 = sld [smem:[#allocation8]]
          %v1472 = vstv %s1471
          %v1473 = vmul.f32 %v1468, %v1472
          %v1474 = vadd.f32 %v1005, %v1473
          %1475 = vst.msk [vmem:[#allocation5] sm:$0xff] %vm1008, %v1474
          %v1476 = vld [vmem:[#allocation13] sm:$0x1]
          %v1477 = vmul.f32 %v1474, %v1474
          %v1478 = vsel %vm1008, %v1477, 0.0
          %1479 = vadd.xlane.f32.xlu0 %v1478
          %v1480 = vpop.xlane.xlu0 %1479
          %v1481 = vmul.f32 %v1480, %v1018
          %v1482 = vadd.f32 %v1481, 1e-05
          %v1483 = vrsqrt.pop %v1482
          %v1484 = vmul.f32 %v1483, %v1482
          %v1485 = vmul.f32 %v1484, %v1483
          %v1486 = vmul.f32 0.5, %v1485
          %v1487 = vsub.f32 1.5, %v1486
          %v1488 = vmul.f32 %v1483, %v1487
          %vm1489 = vweird.f32 %v1482
          %vm1490 = vweird.f32 %v1483
          %vm1491 = vmor %vm1489, %vm1490
          %v1492 = vsel %vm1491, %v1483, %v1488
          %v1493 = vmul.f32 %v1474, %v1492
          %v1495 = vperm.slane %v1476, 0
          %v1497 = vmul.f32 %v1493, %v1495
          %v1498 = vpack.c.bf16 %v1497, %v1497
          %vm1499 = vcmask 257024
          %1500 = vst.msk [vmem:[#allocation6] sm:$0xf] %vm1499, %v1498
          %1501 = vst.msk [vmem:[#allocation7] sm:$0xff] %vm1008, 0.0
        $region182: #{tpu_custom_call.1} parent=157 // pred_fallthru
          _
        %v1502 = vld [vmem:[#allocation6] sm:$0xf]
        %v1503 = vld [vmem:[%s711] sm:$0xf]
        %v1504 = vld [vmem:[%s711 + $0x4] sm:$0xf]
        %v1505 = vld [vmem:[%s711 + $0x8] sm:$0xf]
        %v1506 = vld [vmem:[%s711 + $0xc] sm:$0xf]
        %v1511 = vunpack.c.l.b16 %v1503
        %v1512 = vunpack.c.l.b16 %v1504
        %v1513 = vunpack.c.l.b16 %v1505
        %v1514 = vunpack.c.l.b16 %v1506
        %v1515 = vpack.c.b16 %v1512, %v1511
        %v1516 = vpack.c.b16 %v1514, %v1513
        %vm1519 = vcmask 261120
        %v1521 = vsel %vm1519, %v1502, 0
        %1523 = vmatpush.bf16.msra.mxu0 0
        %1524 = vmatpush.bf16.msra.mxu0 0
        %1525 = vmatpush.bf16.msra.mxu0 0
        %1526 = vmatpush.bf16.msra.mxu0 0
        %1527 = vmatpush.bf16.msra.mxu0 0
        %1528 = vmatpush.bf16.msra.mxu0 0
        %1529 = vmatpush.bf16.msra.mxu0 %v1516
        %1530 = vmatpush.bf16.msra.mxu0 %v1515
        %1531 = vmatmul.bf16.gmra.mxu0 %v1521
        %v1532 = vpop.f32.mrf.mxu0
        %v1533 = vadd.f32 0.0, %v1532
        %v1534 = vpop.f32.mrf.mxu0
        %1535 = vdwg.mxu0
        %v1536 = vld [vmem:[%s718] sm:$0xf]
        %v1537 = vld [vmem:[%s718 + $0x4] sm:$0xf]
        %v1538 = vld [vmem:[%s718 + $0x8] sm:$0xf]
        %v1539 = vld [vmem:[%s718 + $0xc] sm:$0xf]
        %v1544 = vunpack.c.l.b16 %v1536
        %v1545 = vunpack.c.l.b16 %v1537
        %v1546 = vunpack.c.l.b16 %v1538
        %v1547 = vunpack.c.l.b16 %v1539
        %v1548 = vpack.c.b16 %v1545, %v1544
        %v1549 = vpack.c.b16 %v1547, %v1546
        %1552 = vmatpush.bf16.msra.mxu0 0
        %1553 = vmatpush.bf16.msra.mxu0 0
        %1554 = vmatpush.bf16.msra.mxu0 0
        %1555 = vmatpush.bf16.msra.mxu0 0
        %1556 = vmatpush.bf16.msra.mxu0 0
        %1557 = vmatpush.bf16.msra.mxu0 0
        %1558 = vmatpush.bf16.msra.mxu0 %v1549
        %1559 = vmatpush.bf16.msra.mxu0 %v1548
        %1560 = vmatmul.bf16.gmra.mxu0 %v1521
        %v1561 = vpop.f32.mrf.mxu0
        %v1562 = vadd.f32 0.0, %v1561
        %v1563 = vpop.f32.mrf.mxu0
        %1564 = vdwg.mxu0
        %v1565 = vxor.u32 %v1533, 2147483648
        %v1566 = vmul.f32 %v1565, 1.442695
        %v1567 = vpow.pop %v1566
        %v1568 = vadd.f32 %v1567, 1.0
        %v1569 = vrcp.pop %v1568
        %v1570 = vmul.f32 %v1568, %v1569
        %v1571 = vsub.f32 1.0, %v1570
        %v1572 = vmul.f32 %v1569, %v1571
        %v1573 = vadd.f32 %v1569, %v1572
        %vm1574 = vweird.f32 %v1568
        %vm1575 = vweird.f32 %v1569
        %vm1576 = vmor %vm1574, %vm1575
        %v1577 = vsel %vm1576, %v1569, %v1573
        %v1578 = vand.u32 2147483647, %v1568
        %vm1579 = vcmp.eq.f32.partialorder %v1578, 8.507059e+37
        %v1580 = vand.u32 %v1568, 2147483648
        %v1581 = vor.u32 1.1754944e-38, %v1580
        %v1582 = vsel %vm1579, %v1581, %v1577
        %v1583 = vmul.f32 1.0, %v1582
        %v1584 = vmul.f32 %v1533, %v1583
        %v1585 = vmul.f32 %v1584, %v1562
        %v1586 = vpack.c.bf16 %v1585, %v1585
        %v1587 = vld [vmem:[#allocation7] sm:$0xff]
        %v1588 = vld [vmem:[%s836] sm:$0xf]
        %v1589 = vld [vmem:[%s836 + $0x4] sm:$0xf]
        %v1590 = vld [vmem:[%s836 + $0x8] sm:$0xf]
        %v1591 = vld [vmem:[%s836 + $0xc] sm:$0xf]
        %v1592 = vld [vmem:[%s836 + $0x10] sm:$0xf]
        %v1593 = vld [vmem:[%s836 + $0x14] sm:$0xf]
        %v1594 = vld [vmem:[%s836 + $0x18] sm:$0xf]
        %v1595 = vld [vmem:[%s836 + $0x1c] sm:$0xf]
        %v1596 = vld [vmem:[%s836 + $0x20] sm:$0xf]
        %v1597 = vld [vmem:[%s836 + $0x24] sm:$0xf]
        %v1598 = vld [vmem:[%s836 + $0x28] sm:$0xf]
        %v1599 = vld [vmem:[%s836 + $0x2c] sm:$0xf]
        %v1600 = vld [vmem:[%s836 + $0x30] sm:$0xf]
        %v1601 = vld [vmem:[%s836 + $0x34] sm:$0xf]
        %v1602 = vld [vmem:[%s836 + $0x38] sm:$0xf]
        %v1603 = vld [vmem:[%s836 + $0x3c] sm:$0xf]
        %v1620 = vunpack.c.l.b16 %v1588
        %v1621 = vunpack.c.l.b16 %v1589
        %v1622 = vunpack.c.l.b16 %v1590
        %v1623 = vunpack.c.l.b16 %v1591
        %v1624 = vunpack.c.l.b16 %v1592
        %v1625 = vunpack.c.l.b16 %v1593
        %v1626 = vunpack.c.l.b16 %v1594
        %v1627 = vunpack.c.l.b16 %v1595
        %v1628 = vunpack.c.l.b16 %v1596
        %v1629 = vunpack.c.l.b16 %v1597
        %v1630 = vunpack.c.l.b16 %v1598
        %v1631 = vunpack.c.l.b16 %v1599
        %v1632 = vunpack.c.l.b16 %v1600
        %v1633 = vunpack.c.l.b16 %v1601
        %v1634 = vunpack.c.l.b16 %v1602
        %v1635 = vunpack.c.l.b16 %v1603
        %v1636 = vpack.c.b16 %v1621, %v1620
        %v1637 = vpack.c.b16 %v1623, %v1622
        %v1638 = vpack.c.b16 %v1625, %v1624
        %v1639 = vpack.c.b16 %v1627, %v1626
        %v1640 = vpack.c.b16 %v1629, %v1628
        %v1641 = vpack.c.b16 %v1631, %v1630
        %v1642 = vpack.c.b16 %v1633, %v1632
        %v1643 = vpack.c.b16 %v1635, %v1634
        %1652 = vmatpush.bf16.msra.mxu0 %v1643
        %1653 = vmatpush.bf16.msra.mxu0 %v1642
        %1654 = vmatpush.bf16.msra.mxu0 %v1641
        %1655 = vmatpush.bf16.msra.mxu0 %v1640
        %1656 = vmatpush.bf16.msra.mxu0 %v1639
        %1657 = vmatpush.bf16.msra.mxu0 %v1638
        %1658 = vmatpush.bf16.msra.mxu0 %v1637
        %1659 = vmatpush.bf16.msra.mxu0 %v1636
        %1660 = vmatmul.bf16.gmra.mxu0 %v1586
        %v1661 = vpop.f32.mrf.mxu0
        %v1662 = vadd.f32 0.0, %v1661
        %v1663 = vpop.f32.mrf.mxu0
        %1664 = vdwg.mxu0
        %v1665 = vadd.f32 %v1587, %v1662
        %1666 = vst.msk [vmem:[#allocation7] sm:$0xff] %vm1519, %v1665
        %p1667 = scmp.eq.s32.totalorder %s41, 1
        // Predicated region
        $region183: #{tpu_custom_call.1} parent=157 // pred_check
          %p1668 = pneg %p1667
        $region184: #{tpu_custom_call.1} parent=157 // pred_check_branch
          %1670 = sbr.rel (%p1668) target = $region186
        $region185: #{tpu_custom_call.1} parent=157 // pred_region
          %v1671 = vld [vmem:[%s831] sm:$0xff]
          %v1672 = vld [vmem:[#allocation5] sm:$0xff]
          %v1673 = vld [vmem:[#allocation7] sm:$0xff]
          %s1674 = sld [smem:[#allocation9]]
          %v1675 = vstv %s1674
          %v1676 = vmul.f32 %v1673, %v1675
          %1678 = vset.pattern.permute.xlu0 0
          %1679 = vperm.xlu0 %1678, %v1671
          %v1680 = vpop.permute.xlu0 %1679
          %v1682 = vmul.f32 %v1676, %v1680
          %v1683 = vadd.f32 %v1672, %v1682
          %1684 = vst.msk [vmem:[%s802] sm:$0xff] %vm1519, %v1683
        $region186: #{tpu_custom_call.1} parent=157 // pred_fallthru
          _
        %s1685 = sand.u32 %s440, 1
        %s1686 = scalar_lea.sflag [#allocation12], %s1685
        %s1687 = sand.u32 %s440, 1
        %s1688 = smul.addr %s1687, 8
        %s1689 = scalar_lea.vmem [#allocation17], %s1688
        // Predicated region
        $region187: #{tpu_custom_call.1} parent=157 // pred_check
          %p1690 = pneg %p450
        $region188: #{tpu_custom_call.1} parent=157 // pred_check_branch
          %1692 = sbr.rel (%p1690) target = $region190
        $region189: #{tpu_custom_call.1} parent=157 // pred_region
          %1694 = vsyncadd %s1686, 0
          %s1695 = smul.addr %s39, 2
          %s1696 = sadd.s32 %s40, %s1695
          %s1697 = smul.addr %s1696, 8
          %s1698 = scalar_lea.hbm %s16, %s1697
          %s1700 = sshll.u32 %s1689, 4
          %s1701 = int_to_ptr.vmem [resolvable:$true] %s1700
          %s1702 = sshll.u32 %s1698, 4
          %s1703 = int_to_ptr.hbm [resolvable:$true] %s1702
          %1705 = dma.vmem_to_hbm [thread:$0]  %s1701, 128, %s1703, %s1686
        $region190: #{tpu_custom_call.1} parent=157 // pred_fallthru
          _
      $region158: #{tpu_custom_call.1} parent=5 // pred_fallthru
        _
      %p1706 = scmp.le.s32.totalorder 2, %s29
      // Predicated region
      $region191: #{tpu_custom_call.1} parent=5 // pred_check
        %p1707 = pneg %p1706
      $region192: #{tpu_custom_call.1} parent=5 // pred_check_branch
        %1709 = sbr.rel (%p1707) target = $region194
      $region193: #{tpu_custom_call.1} parent=5 // pred_region
        %s1710 = ssub.s32 %s29, 2
        // Predicated region
        $region195: #{tpu_custom_call.1} parent=193 // pred_check
          %p1711 = pneg %p456
        $region196: #{tpu_custom_call.1} parent=193 // pred_check_branch
          %1713 = sbr.rel (%p1711) target = $region198
        $region197: #{tpu_custom_call.1} parent=193 // pred_region
          %s1714 = sand.u32 %s441, 1
          %s1715 = scalar_lea.sflag [#allocation12], %s1714
          %s1716 = sand.u32 %s441, 1
          %s1717 = smul.addr %s1716, 8
          %s1718 = scalar_lea.vmem [#allocation17], %s1717
          %1720 = dma.done %s1715, 128
        $region198: #{tpu_custom_call.1} parent=193 // pred_fallthru
          _
      $region194: #{tpu_custom_call.1} parent=5 // pred_fallthru
        _
    $region6: #{tpu_custom_call.1} parent=1 // loop_footer
      %s33 = sadd.s32 1, %s29
    $region7: #{tpu_custom_call.1} parent=1 // loop_footer_branch
      %28 = sbr.rel target = $region3
    $region8: #{tpu_custom_call.1} parent=1 // loop_exit
      _
    %1721 = vsyncpa [#allocation11], 1
    %s1722 = scalar_lea.sflag [#allocation11], 1
    %1723 = vsyncpa %s1722, 1
    %1724 = vsyncpa [#allocation14], 1
    %1725 = vsyncpa [#allocation12], 1
    %s1726 = scalar_lea.sflag [#allocation12], 1
    %1727 = vsyncpa %s1726, 1

</llo_original>
